<compile_context>
chip_gen: v6e
topology: v6e:2x2x1
jax: 0.10.0
libtpu: 0.0.40
codegen_flags: <defaults>
</compile_context>

<pallas_src>
import functools

import jax
import jax.numpy as jnp
from jax.experimental import pallas as pl
from jax.experimental.pallas import tpu as pltpu


def mlp_kernel(x_ref, w1_ref, b1_ref, wh_ref, bh_ref, wo_ref, bo_ref, o_ref,
               *, num_hidden_layers):
    # Weights arrive in bf16 (pre-cast once in prepare_params); accumulate in f32.
    w1 = w1_ref[...]
    cd = w1.dtype  # MXU compute dtype (bf16)

    # --- first layer: Linear -> Dropout -> ReLU -------------------------------
    h = jnp.dot(x_ref[...].astype(cd), w1, preferred_element_type=jnp.float32)
    h = jnp.maximum(h + b1_ref[...], 0.0)
    # TODO(synk): Dropout(p=0.3) is stochastic and only active in training mode;
    # eval-mode (identity) semantics are implemented here.

    # --- shared hidden layers (same weights reused, as in the PyTorch module) --
    wh = wh_ref[...]
    bh = bh_ref[...]

    def hidden_body(_, h_carry):
        hh = jnp.dot(h_carry.astype(cd), wh, preferred_element_type=jnp.float32)
        return jnp.maximum(hh + bh, 0.0)

    if num_hidden_layers > 0:
        # Full unroll for small depth; partial unroll keeps the dot chain visible
        # to the scheduler while bounding live ranges for deep stacks.
        unroll = num_hidden_layers if num_hidden_layers <= 8 else 4
        h = jax.lax.fori_loop(0, num_hidden_layers, hidden_body, h,
                              unroll=unroll)

    # --- last layer: Linear only ------------------------------------------------
    out = jnp.dot(h.astype(cd), wo_ref[...],
                  preferred_element_type=jnp.float32) + bo_ref[...]
    o_ref[...] = out.astype(o_ref.dtype)


def _round_up(x, m):
    return ((x + m - 1) // m) * m


def prepare_params(params, compute_dtype=jnp.bfloat16):
    """Cast / lane-pad the weights ONCE (outside the per-step forward).

    Weight matrices -> bf16, hidden dim padded to a multiple of 128.
    Input (K of first matmul) and output feature dims are left unpadded.
    Biases stay f32.
    """
    w1, b1, wh, bh, wo, bo = params
    inputs, hidden = w1.shape
    outputs = wo.shape[1]
    h_pad = _round_up(hidden, 128)

    def pad2(a, rows, cols, dtype):
        a = a.astype(dtype)
        pr, pc = rows - a.shape[0], cols - a.shape[1]
        if pr or pc:
            a = jnp.pad(a, ((0, pr), (0, pc)))
        return a

    w1p = pad2(w1, inputs, h_pad, compute_dtype)
    whp = pad2(wh, h_pad, h_pad, compute_dtype)
    wop = pad2(wo, h_pad, outputs, compute_dtype)
    b1p = pad2(b1.reshape(1, -1), 1, h_pad, jnp.float32)
    bhp = pad2(bh.reshape(1, -1), 1, h_pad, jnp.float32)
    bop = bo.reshape(1, -1).astype(jnp.float32)
    return w1p, b1p, whp, bhp, wop, bop


def _pallas_forward(xp, prepped, num_hidden_layers, block_batch,
                    single_buffer_weights):
    w1p, b1p, whp, bhp, wop, bop = prepped
    b_pad, inputs = xp.shape
    h_pad = w1p.shape[1]
    outputs = wop.shape[1]
    grid = (b_pad // block_batch,)

    def wspec(shape):
        # Resident operands (constant index_map): single-buffer them when the
        # installed jax supports pipeline_mode on pallas_call BlockSpecs.
        kwargs = {}
        if single_buffer_weights and hasattr(pl, "Buffered"):
            kwargs["pipeline_mode"] = pl.Buffered(1)
        return pl.BlockSpec(shape, lambda i: (0, 0), **kwargs)

    kernel = functools.partial(mlp_kernel, num_hidden_layers=num_hidden_layers)

    flops = 2 * b_pad * (inputs * h_pad
                         + num_hidden_layers * h_pad * h_pad
                         + h_pad * outputs)
    bytes_accessed = (xp.size * xp.dtype.itemsize
                      + sum(int(a.size) * a.dtype.itemsize
                            for a in (w1p, whp, wop, b1p, bhp, bop))
                      + b_pad * outputs * 4)

    return pl.pallas_call(
        kernel,
        out_shape=jax.ShapeDtypeStruct((b_pad, outputs), jnp.float32),
        grid=grid,
        in_specs=[
            pl.BlockSpec((block_batch, inputs), lambda i: (i, 0)),  # raw x tile
            wspec((inputs, h_pad)),   # w1 (resident)
            wspec((1, h_pad)),        # b1 (resident)
            wspec((h_pad, h_pad)),    # wh (resident, shared layer)
            wspec((1, h_pad)),        # bh (resident, shared layer)
            wspec((h_pad, outputs)),  # wo (resident)
            wspec((1, outputs)),      # bo (resident)
        ],
        out_specs=pl.BlockSpec((block_batch, outputs), lambda i: (i, 0)),
        compiler_params=pltpu.CompilerParams(
            dimension_semantics=("parallel",)),
        cost_estimate=pl.CostEstimate(
            flops=int(flops), transcendentals=0,
            bytes_accessed=int(bytes_accessed)),
    )(xp, w1p, b1p, whp, bhp, wop, bop)


def net_forward(x, prepped_params, num_hidden_layers, *, block_batch=None):
    """Fused MLP forward.

    block_batch=None  -> grid == 1 (best on single-TC v5e/v6e).
    On v7x pass block_batch ~= ceil(batch/2) rounded to a multiple of 8 so the
    "parallel" batch axis shards across the 2 TensorCores.
    """
    batch, inputs = x.shape
    assert inputs == prepped_params[0].shape[0], "x feature dim mismatch"

    if block_batch is None:
        block_batch = _round_up(batch, 8)          # single grid step
    else:
        block_batch = _round_up(block_batch, 8)
    b_pad = _round_up(batch, block_batch)

    xp = x if x.dtype == jnp.float32 else x.astype(jnp.float32)
    if b_pad != batch:
        xp = jnp.pad(xp, ((0, b_pad - batch), (0, 0)))

    try:
        out = _pallas_forward(xp, prepped_params, num_hidden_layers,
                              block_batch, single_buffer_weights=True)
    except Exception:
        # Older jax without BlockSpec pipeline_mode support: plain double-buffered
        # resident weights (correct either way, tiny VMEM difference).
        out = _pallas_forward(xp, prepped_params, num_hidden_layers,
                              block_batch, single_buffer_weights=False)

    return out if b_pad == batch else out[:batch]


def init_params(key, inputs, outputs, hidden_dim):
    """Deterministic PyTorch-style Linear init: U(-1/sqrt(fan_in), 1/sqrt(fan_in)).
    Weights are stored transposed: [in_features, out_features]."""
    ks = jax.random.split(key, 6)

    def lin(kw, kb, fan_in, fan_out):
        bound = 1.0 / jnp.sqrt(float(fan_in))
        w = jax.random.uniform(kw, (fan_in, fan_out), jnp.float32, -bound, bound)
        b = jax.random.uniform(kb, (1, fan_out), jnp.float32, -bound, bound)
        return w, b

    w1, b1 = lin(ks[0], ks[1], inputs, hidden_dim)
    wh, bh = lin(ks[2], ks[3], hidden_dim, hidden_dim)
    wo, bo = lin(ks[4], ks[5], hidden_dim, outputs)
    return w1, b1, wh, bh, wo, bo


def net_forward_ref(x, params, num_hidden_layers, compute_dtype=jnp.bfloat16):
    """Pure-JAX reference with the same precision contract as the kernel
    (bf16 MXU operands, f32 accumulate, eval-mode dropout = identity)."""
    w1, b1, wh, bh, wo, bo = params

    def mm(a, w):
        return jnp.dot(a.astype(compute_dtype), w.astype(compute_dtype),
                       preferred_element_type=jnp.float32)

    h = jnp.maximum(mm(x, w1) + b1, 0.0)
    for _ in range(num_hidden_layers):
        h = jnp.maximum(mm(h, wh) + bh, 0.0)
    return mm(h, wo) + bo


if __name__ == "__main__":
    inputs = 32
    outputs = 8
    num_hidden_layers = 2
    hidden_dim = inputs * 4  # 128

    key = jax.random.PRNGKey(0)
    k_x, k_p, k_x2 = jax.random.split(key, 3)
    params = init_params(k_p, inputs, outputs, hidden_dim)
    prepped = prepare_params(params)   # pad/cast weights ONCE, reuse per forward

    # Case 1: default -> grid == 1 (single-step; v5e/v6e-friendly), raw f32 x,
    # narrow f32 output, resident weights.
    x_big = jax.random.normal(k_x, (256, inputs), jnp.float32)
    out_big = jax.block_until_ready(
        net_forward(x_big, prepped, num_hidden_layers))
    ref_big = net_forward_ref(x_big, params, num_hidden_layers)
    assert out_big.shape == (256, outputs)
    assert jnp.allclose(out_big, ref_big, atol=2e-3, rtol=2e-3), \
        "grid=1 mismatch vs JAX reference"

    # Case 2: explicit 2-step grid (v7x-style batch sharding across 2 TCs) plus a
    # batch that is not a multiple of the tile (exercises row padding + slice).
    x_small = jax.random.normal(k_x2, (200, inputs), jnp.float32)
    out_small = jax.block_until_ready(
        net_forward(x_small, prepped, num_hidden_layers, block_batch=128))
    ref_small = net_forward_ref(x_small, params, num_hidden_layers)
    assert out_small.shape == (200, outputs)
    assert jnp.allclose(out_small, ref_small, atol=2e-3, rtol=2e-3), \
        "tiled-batch mismatch vs JAX reference"

    print("KERNEL_OK")
</pallas_src>

<mosaic_0001>
module attributes {stable_mosaic.version = 11 : i64} {
  func.func @mlp_kernel(%arg0: i32, %arg1: memref<256x32xf32, #tpu.memory_space<vmem>>, %arg2: memref<32x128xbf16, #tpu.memory_space<vmem>>, %arg3: memref<1x128xf32, #tpu.memory_space<vmem>>, %arg4: memref<128x128xbf16, #tpu.memory_space<vmem>>, %arg5: memref<1x128xf32, #tpu.memory_space<vmem>>, %arg6: memref<128x8xbf16, #tpu.memory_space<vmem>>, %arg7: memref<1x8xf32, #tpu.memory_space<vmem>>, %arg8: memref<256x8xf32, #tpu.memory_space<vmem>>) attributes {dimension_semantics = [#tpu.dimension_semantics<parallel>], iteration_bounds = array<i64: 1>, scalar_prefetch = 0 : i64, scratch_operands = 0 : i64, tpu.core_type = #tpu.core_type<tc>, window_params = [{transform_indices = @transform_0, window_bounds = array<i64: 256, 32>}, {pipeline_mode = #tpu.pipeline_mode<synchronous>, transform_indices = @transform_1, window_bounds = array<i64: 32, 128>}, {pipeline_mode = #tpu.pipeline_mode<synchronous>, transform_indices = @transform_2, window_bounds = array<i64: 1, 128>}, {pipeline_mode = #tpu.pipeline_mode<synchronous>, transform_indices = @transform_3, window_bounds = array<i64: 128, 128>}, {pipeline_mode = #tpu.pipeline_mode<synchronous>, transform_indices = @transform_4, window_bounds = array<i64: 1, 128>}, {pipeline_mode = #tpu.pipeline_mode<synchronous>, transform_indices = @transform_5, window_bounds = array<i64: 128, 8>}, {pipeline_mode = #tpu.pipeline_mode<synchronous>, transform_indices = @transform_6, window_bounds = array<i64: 1, 8>}, {transform_indices = @transform_7, window_bounds = array<i64: 256, 8>}]} {
    %c0 = arith.constant 0 : index
    %c0_0 = arith.constant 0 : index
    %0 = vector.load %arg2[%c0, %c0_0] : memref<32x128xbf16, #tpu.memory_space<vmem>>, vector<32x128xbf16>
    %c0_1 = arith.constant 0 : index
    %c0_2 = arith.constant 0 : index
    %1 = vector.load %arg1[%c0_1, %c0_2] : memref<256x32xf32, #tpu.memory_space<vmem>>, vector<256x32xf32>
    %2 = arith.truncf %1 : vector<256x32xf32> to vector<256x32xbf16>
    %cst = arith.constant dense<0.000000e+00> : vector<256x128xf32>
    %3 = tpu.matmul %2, %0, %cst {dimension_numbers = #tpu.dot_dimension_numbers<[1], [0], [0], [1], [0, 0, 1, 1], [], []>} : vector<256x32xbf16>, vector<32x128xbf16>, vector<256x128xf32> -> vector<256x128xf32>
    %c0_3 = arith.constant 0 : index
    %c0_4 = arith.constant 0 : index
    %4 = vector.load %arg3[%c0_3, %c0_4] : memref<1x128xf32, #tpu.memory_space<vmem>>, vector<1x128xf32>
    %5 = vector.broadcast %4 : vector<1x128xf32> to vector<256x128xf32>
    %6 = arith.addf %3, %5 : vector<256x128xf32>
    %cst_5 = arith.constant 0.000000e+00 : f32
    %7 = vector.broadcast %cst_5 : f32 to vector<256x128xf32>
    %8 = arith.maximumf %6, %7 : vector<256x128xf32>
    %c0_6 = arith.constant 0 : index
    %c0_7 = arith.constant 0 : index
    %9 = vector.load %arg4[%c0_6, %c0_7] : memref<128x128xbf16, #tpu.memory_space<vmem>>, vector<128x128xbf16>
    %c0_8 = arith.constant 0 : index
    %c0_9 = arith.constant 0 : index
    %10 = vector.load %arg5[%c0_8, %c0_9] : memref<1x128xf32, #tpu.memory_space<vmem>>, vector<1x128xf32>
    %c0_i32 = arith.constant 0 : i32
    %11 = arith.truncf %8 : vector<256x128xf32> to vector<256x128xbf16>
    %cst_10 = arith.constant dense<0.000000e+00> : vector<256x128xf32>
    %12 = tpu.matmul %11, %9, %cst_10 {dimension_numbers = #tpu.dot_dimension_numbers<[1], [0], [0], [1], [0, 0, 1, 1], [], []>} : vector<256x128xbf16>, vector<128x128xbf16>, vector<256x128xf32> -> vector<256x128xf32>
    %13 = vector.broadcast %10 : vector<1x128xf32> to vector<256x128xf32>
    %14 = arith.addf %12, %13 : vector<256x128xf32>
    %cst_11 = arith.constant 0.000000e+00 : f32
    %15 = vector.broadcast %cst_11 : f32 to vector<256x128xf32>
    %16 = arith.maximumf %14, %15 : vector<256x128xf32>
    %c1_i32 = arith.constant 1 : i32
    %17 = arith.truncf %16 : vector<256x128xf32> to vector<256x128xbf16>
    %cst_12 = arith.constant dense<0.000000e+00> : vector<256x128xf32>
    %18 = tpu.matmul %17, %9, %cst_12 {dimension_numbers = #tpu.dot_dimension_numbers<[1], [0], [0], [1], [0, 0, 1, 1], [], []>} : vector<256x128xbf16>, vector<128x128xbf16>, vector<256x128xf32> -> vector<256x128xf32>
    %19 = vector.broadcast %10 : vector<1x128xf32> to vector<256x128xf32>
    %20 = arith.addf %18, %19 : vector<256x128xf32>
    %cst_13 = arith.constant 0.000000e+00 : f32
    %21 = vector.broadcast %cst_13 : f32 to vector<256x128xf32>
    %22 = arith.maximumf %20, %21 : vector<256x128xf32>
    %23 = arith.truncf %22 : vector<256x128xf32> to vector<256x128xbf16>
    %c0_14 = arith.constant 0 : index
    %c0_15 = arith.constant 0 : index
    %24 = vector.load %arg6[%c0_14, %c0_15] : memref<128x8xbf16, #tpu.memory_space<vmem>>, vector<128x8xbf16>
    %cst_16 = arith.constant dense<0.000000e+00> : vector<256x8xf32>
    %25 = tpu.matmul %23, %24, %cst_16 {dimension_numbers = #tpu.dot_dimension_numbers<[1], [0], [0], [1], [0, 0, 1, 1], [], []>} : vector<256x128xbf16>, vector<128x8xbf16>, vector<256x8xf32> -> vector<256x8xf32>
    %c0_17 = arith.constant 0 : index
    %c0_18 = arith.constant 0 : index
    %26 = vector.load %arg7[%c0_17, %c0_18] : memref<1x8xf32, #tpu.memory_space<vmem>>, vector<1x8xf32>
    %27 = vector.broadcast %26 : vector<1x8xf32> to vector<256x8xf32>
    %28 = arith.addf %25, %27 : vector<256x8xf32>
    %c0_19 = arith.constant 0 : index
    %c0_20 = arith.constant 0 : index
    %29 = vector.load %arg8[%c0_19, %c0_20] : memref<256x8xf32, #tpu.memory_space<vmem>>, vector<256x8xf32>
    tpu.vector_store %arg8[%c0_19, %c0_20], %28 {strides = array<i32>} : memref<256x8xf32, #tpu.memory_space<vmem>>, vector<256x8xf32>,
    return
  }
  func.func @transform_0(%arg0: i32) -> (i32, i32) {
    %c0_i32 = arith.constant 0 : i32
    %c0_i32_0 = arith.constant 0 : i32
    return %arg0, %c0_i32 : i32, i32
  }
  func.func @transform_1(%arg0: i32) -> (i32, i32) {
    %c0_i32 = arith.constant 0 : i32
    %c0_i32_0 = arith.constant 0 : i32
    %c0_i32_1 = arith.constant 0 : i32
    return %c0_i32, %c0_i32_0 : i32, i32
  }
  func.func @transform_2(%arg0: i32) -> (i32, i32) {
    %c0_i32 = arith.constant 0 : i32
    %c0_i32_0 = arith.constant 0 : i32
    %c0_i32_1 = arith.constant 0 : i32
    return %c0_i32, %c0_i32_0 : i32, i32
  }
  func.func @transform_3(%arg0: i32) -> (i32, i32) {
    %c0_i32 = arith.constant 0 : i32
    %c0_i32_0 = arith.constant 0 : i32
    %c0_i32_1 = arith.constant 0 : i32
    return %c0_i32, %c0_i32_0 : i32, i32
  }
  func.func @transform_4(%arg0: i32) -> (i32, i32) {
    %c0_i32 = arith.constant 0 : i32
    %c0_i32_0 = arith.constant 0 : i32
    %c0_i32_1 = arith.constant 0 : i32
    return %c0_i32, %c0_i32_0 : i32, i32
  }
  func.func @transform_5(%arg0: i32) -> (i32, i32) {
    %c0_i32 = arith.constant 0 : i32
    %c0_i32_0 = arith.constant 0 : i32
    %c0_i32_1 = arith.constant 0 : i32
    return %c0_i32, %c0_i32_0 : i32, i32
  }
  func.func @transform_6(%arg0: i32) -> (i32, i32) {
    %c0_i32 = arith.constant 0 : i32
    %c0_i32_0 = arith.constant 0 : i32
    %c0_i32_1 = arith.constant 0 : i32
    return %c0_i32, %c0_i32_0 : i32, i32
  }
  func.func @transform_7(%arg0: i32) -> (i32, i32) {
    %c0_i32 = arith.constant 0 : i32
    %c0_i32_0 = arith.constant 0 : i32
    return %arg0, %c0_i32 : i32, i32
  }
}

module attributes {stable_mosaic.version = 11 : i64} {
  func.func @mlp_kernel(%arg0: i32, %arg1: memref<256x32xf32, #tpu.memory_space<vmem>>, %arg2: memref<32x128xbf16, #tpu.memory_space<vmem>>, %arg3: memref<1x128xf32, #tpu.memory_space<vmem>>, %arg4: memref<128x128xbf16, #tpu.memory_space<vmem>>, %arg5: memref<1x128xf32, #tpu.memory_space<vmem>>, %arg6: memref<128x8xbf16, #tpu.memory_space<vmem>>, %arg7: memref<1x8xf32, #tpu.memory_space<vmem>>, %arg8: memref<256x8xf32, #tpu.memory_space<vmem>>) attributes {dimension_semantics = [#tpu.dimension_semantics<parallel>], iteration_bounds = array<i64: 1>, scalar_prefetch = 0 : i64, scratch_operands = 0 : i64, tpu.core_type = #tpu.core_type<tc>, window_params = [{transform_indices = @transform_0, window_bounds = array<i64: 256, 32>}, {pipeline_mode = #tpu.pipeline_mode<synchronous>, transform_indices = @transform_1, window_bounds = array<i64: 32, 128>}, {pipeline_mode = #tpu.pipeline_mode<synchronous>, transform_indices = @transform_2, window_bounds = array<i64: 1, 128>}, {pipeline_mode = #tpu.pipeline_mode<synchronous>, transform_indices = @transform_3, window_bounds = array<i64: 128, 128>}, {pipeline_mode = #tpu.pipeline_mode<synchronous>, transform_indices = @transform_4, window_bounds = array<i64: 1, 128>}, {pipeline_mode = #tpu.pipeline_mode<synchronous>, transform_indices = @transform_5, window_bounds = array<i64: 128, 8>}, {pipeline_mode = #tpu.pipeline_mode<synchronous>, transform_indices = @transform_6, window_bounds = array<i64: 1, 8>}, {transform_indices = @transform_7, window_bounds = array<i64: 256, 8>}]} {
    %c0 = arith.constant 0 : index
    %c0_0 = arith.constant 0 : index
    %0 = vector.load %arg2[%c0, %c0_0] : memref<32x128xbf16, #tpu.memory_space<vmem>>, vector<32x128xbf16>
    %c0_1 = arith.constant 0 : index
    %c0_2 = arith.constant 0 : index
    %1 = vector.load %arg1[%c0_1, %c0_2] : memref<256x32xf32, #tpu.memory_space<vmem>>, vector<256x32xf32>
    %2 = arith.truncf %1 : vector<256x32xf32> to vector<256x32xbf16>
    %cst = arith.constant dense<0.000000e+00> : vector<256x128xf32>
    %3 = tpu.matmul %2, %0, %cst {dimension_numbers = #tpu.dot_dimension_numbers<[1], [0], [0], [1], [0, 0, 1, 1], [], []>} : vector<256x32xbf16>, vector<32x128xbf16>, vector<256x128xf32> -> vector<256x128xf32>
    %c0_3 = arith.constant 0 : index
    %c0_4 = arith.constant 0 : index
    %4 = vector.load %arg3[%c0_3, %c0_4] : memref<1x128xf32, #tpu.memory_space<vmem>>, vector<1x128xf32>
    %5 = vector.broadcast %4 : vector<1x128xf32> to vector<256x128xf32>
    %6 = arith.addf %3, %5 : vector<256x128xf32>
    %cst_5 = arith.constant 0.000000e+00 : f32
    %7 = vector.broadcast %cst_5 : f32 to vector<256x128xf32>
    %8 = arith.maximumf %6, %7 : vector<256x128xf32>
    %c0_6 = arith.constant 0 : index
    %c0_7 = arith.constant 0 : index
    %9 = vector.load %arg4[%c0_6, %c0_7] : memref<128x128xbf16, #tpu.memory_space<vmem>>, vector<128x128xbf16>
    %c0_8 = arith.constant 0 : index
    %c0_9 = arith.constant 0 : index
    %10 = vector.load %arg5[%c0_8, %c0_9] : memref<1x128xf32, #tpu.memory_space<vmem>>, vector<1x128xf32>
    %c0_i32 = arith.constant 0 : i32
    %11 = arith.truncf %8 : vector<256x128xf32> to vector<256x128xbf16>
    %cst_10 = arith.constant dense<0.000000e+00> : vector<256x128xf32>
    %12 = tpu.matmul %11, %9, %cst_10 {dimension_numbers = #tpu.dot_dimension_numbers<[1], [0], [0], [1], [0, 0, 1, 1], [], []>} : vector<256x128xbf16>, vector<128x128xbf16>, vector<256x128xf32> -> vector<256x128xf32>
    %13 = vector.broadcast %10 : vector<1x128xf32> to vector<256x128xf32>
    %14 = arith.addf %12, %13 : vector<256x128xf32>
    %cst_11 = arith.constant 0.000000e+00 : f32
    %15 = vector.broadcast %cst_11 : f32 to vector<256x128xf32>
    %16 = arith.maximumf %14, %15 : vector<256x128xf32>
    %c1_i32 = arith.constant 1 : i32
    %17 = arith.truncf %16 : vector<256x128xf32> to vector<256x128xbf16>
    %cst_12 = arith.constant dense<0.000000e+00> : vector<256x128xf32>
    %18 = tpu.matmul %17, %9, %cst_12 {dimension_numbers = #tpu.dot_dimension_numbers<[1], [0], [0], [1], [0, 0, 1, 1], [], []>} : vector<256x128xbf16>, vector<128x128xbf16>, vector<256x128xf32> -> vector<256x128xf32>
    %19 = vector.broadcast %10 : vector<1x128xf32> to vector<256x128xf32>
    %20 = arith.addf %18, %19 : vector<256x128xf32>
    %cst_13 = arith.constant 0.000000e+00 : f32
    %21 = vector.broadcast %cst_13 : f32 to vector<256x128xf32>
    %22 = arith.maximumf %20, %21 : vector<256x128xf32>
    %23 = arith.truncf %22 : vector<256x128xf32> to vector<256x128xbf16>
    %c0_14 = arith.constant 0 : index
    %c0_15 = arith.constant 0 : index
    %24 = vector.load %arg6[%c0_14, %c0_15] : memref<128x8xbf16, #tpu.memory_space<vmem>>, vector<128x8xbf16>
    %cst_16 = arith.constant dense<0.000000e+00> : vector<256x8xf32>
    %25 = tpu.matmul %23, %24, %cst_16 {dimension_numbers = #tpu.dot_dimension_numbers<[1], [0], [0], [1], [0, 0, 1, 1], [], []>} : vector<256x128xbf16>, vector<128x8xbf16>, vector<256x8xf32> -> vector<256x8xf32>
    %c0_17 = arith.constant 0 : index
    %c0_18 = arith.constant 0 : index
    %26 = vector.load %arg7[%c0_17, %c0_18] : memref<1x8xf32, #tpu.memory_space<vmem>>, vector<1x8xf32>
    %27 = vector.broadcast %26 : vector<1x8xf32> to vector<256x8xf32>
    %28 = arith.addf %25, %27 : vector<256x8xf32>
    %c0_19 = arith.constant 0 : index
    %c0_20 = arith.constant 0 : index
    %29 = vector.load %arg8[%c0_19, %c0_20] : memref<256x8xf32, #tpu.memory_space<vmem>>, vector<256x8xf32>
    tpu.vector_store %arg8[%c0_19, %c0_20], %28 {strides = array<i32>} : memref<256x8xf32, #tpu.memory_space<vmem>>, vector<256x8xf32>,
    return
  }
  func.func @transform_0(%arg0: i32) -> (i32, i32) {
    %c0_i32 = arith.constant 0 : i32
    %c0_i32_0 = arith.constant 0 : i32
    return %arg0, %c0_i32 : i32, i32
  }
  func.func @transform_1(%arg0: i32) -> (i32, i32) {
    %c0_i32 = arith.constant 0 : i32
    %c0_i32_0 = arith.constant 0 : i32
    %c0_i32_1 = arith.constant 0 : i32
    return %c0_i32, %c0_i32_0 : i32, i32
  }
  func.func @transform_2(%arg0: i32) -> (i32, i32) {
    %c0_i32 = arith.constant 0 : i32
    %c0_i32_0 = arith.constant 0 : i32
    %c0_i32_1 = arith.constant 0 : i32
    return %c0_i32, %c0_i32_0 : i32, i32
  }
  func.func @transform_3(%arg0: i32) -> (i32, i32) {
    %c0_i32 = arith.constant 0 : i32
    %c0_i32_0 = arith.constant 0 : i32
    %c0_i32_1 = arith.constant 0 : i32
    return %c0_i32, %c0_i32_0 : i32, i32
  }
  func.func @transform_4(%arg0: i32) -> (i32, i32) {
    %c0_i32 = arith.constant 0 : i32
    %c0_i32_0 = arith.constant 0 : i32
    %c0_i32_1 = arith.constant 0 : i32
    return %c0_i32, %c0_i32_0 : i32, i32
  }
  func.func @transform_5(%arg0: i32) -> (i32, i32) {
    %c0_i32 = arith.constant 0 : i32
    %c0_i32_0 = arith.constant 0 : i32
    %c0_i32_1 = arith.constant 0 : i32
    return %c0_i32, %c0_i32_0 : i32, i32
  }
  func.func @transform_6(%arg0: i32) -> (i32, i32) {
    %c0_i32 = arith.constant 0 : i32
    %c0_i32_0 = arith.constant 0 : i32
    %c0_i32_1 = arith.constant 0 : i32
    return %c0_i32, %c0_i32_0 : i32, i32
  }
  func.func @transform_7(%arg0: i32) -> (i32, i32) {
    %c0_i32 = arith.constant 0 : i32
    %c0_i32_0 = arith.constant 0 : i32
    return %arg0, %c0_i32 : i32, i32
  }
}

</mosaic_0001>

<llo_original>
// kernel: tpu_custom_call.1
$region0: #{tpu_custom_call.1}
  #allocation0 [shape = 'u32[]', space=smem, size = 0x4, offset = 0x4, fixed_abs, tag = 'smem constant byte address 0x4 - core index']
  #allocation1 [shape = 'u32[144,128]{1,0:T(1,128)}', space=vmem, size = 0x12000, scoped, tag = 'internal scratch']
  %s0 = inlined_call_operand.vmem [shape: f32[256,32], index: 0, kind: input, shape index: {}]
  %s1 = inlined_call_operand.vmem [shape: bf16[32,128], index: 1, kind: input, shape index: {}]
  %s2 = inlined_call_operand.vmem [shape: f32[1,128], index: 2, kind: input, shape index: {}]
  %s3 = inlined_call_operand.vmem [shape: bf16[128,128], index: 3, kind: input, shape index: {}]
  %s4 = inlined_call_operand.vmem [shape: f32[1,128], index: 4, kind: input, shape index: {}]
  %s5 = inlined_call_operand.vmem [shape: bf16[128,8], index: 5, kind: input, shape index: {}]
  %s6 = inlined_call_operand.vmem [shape: f32[1,8], index: 6, kind: input, shape index: {}]
  %s7 = inlined_call_operand.vmem [shape: f32[256,8], index: 7, kind: output, shape index: {}]
  %s8 = sld [smem:[#allocation0]]
  $region38: #{tpu_custom_call.1} parent=0
    _
  %s10 = ssub.s32 1, %s8
  %s11 = scalar_select 0, %s10, %s8
  // Predicated region
  $region2: #{tpu_custom_call.1} parent=0 // pred_check
    _
  $region3: #{tpu_custom_call.1} parent=0 // pred_check_branch
    %13 = sbr.rel (0) target = $region5
  $region4: #{tpu_custom_call.1} parent=0 // pred_region
    _
  $region5: #{tpu_custom_call.1} parent=0 // pred_fallthru
    _
  // Predicated region
  $region6: #{tpu_custom_call.1} parent=0 // pred_check
    _
  $region7: #{tpu_custom_call.1} parent=0 // pred_check_branch
    %15 = sbr.rel (0) target = $region9
  $region8: #{tpu_custom_call.1} parent=0 // pred_region
    _
  $region9: #{tpu_custom_call.1} parent=0 // pred_fallthru
    _
  // Predicated region
  $region10: #{tpu_custom_call.1} parent=0 // pred_check
    _
  $region11: #{tpu_custom_call.1} parent=0 // pred_check_branch
    %17 = sbr.rel (0) target = $region13
  $region12: #{tpu_custom_call.1} parent=0 // pred_region
    _
  $region13: #{tpu_custom_call.1} parent=0 // pred_fallthru
    _
  // Predicated region
  $region14: #{tpu_custom_call.1} parent=0 // pred_check
    _
  $region15: #{tpu_custom_call.1} parent=0 // pred_check_branch
    %19 = sbr.rel (0) target = $region17
  $region16: #{tpu_custom_call.1} parent=0 // pred_region
    _
  $region17: #{tpu_custom_call.1} parent=0 // pred_fallthru
    _
  // Predicated region
  $region18: #{tpu_custom_call.1} parent=0 // pred_check
    _
  $region19: #{tpu_custom_call.1} parent=0 // pred_check_branch
    %21 = sbr.rel (0) target = $region21
  $region20: #{tpu_custom_call.1} parent=0 // pred_region
    _
  $region21: #{tpu_custom_call.1} parent=0 // pred_fallthru
    _
  // Predicated region
  $region22: #{tpu_custom_call.1} parent=0 // pred_check
    _
  $region23: #{tpu_custom_call.1} parent=0 // pred_check_branch
    %23 = sbr.rel (0) target = $region25
  $region24: #{tpu_custom_call.1} parent=0 // pred_region
    _
  $region25: #{tpu_custom_call.1} parent=0 // pred_fallthru
    _
  // Predicated region
  $region26: #{tpu_custom_call.1} parent=0 // pred_check
    _
  $region27: #{tpu_custom_call.1} parent=0 // pred_check_branch
    %25 = sbr.rel (0) target = $region29
  $region28: #{tpu_custom_call.1} parent=0 // pred_region
    _
  $region29: #{tpu_custom_call.1} parent=0 // pred_fallthru
    _
  %v27 = vld [vmem:[%s1] sm:$0xf]
  %v28 = vld [vmem:[%s1 + $0x4] sm:$0xf]
  %v29 = vld [vmem:[%s1 + $0x8] sm:$0xf]
  %v30 = vld [vmem:[%s1 + $0xc] sm:$0xf]
  %v31 = vld [vmem:[%s0] sm:$0xff]
  %v32 = vld [vmem:[%s0 + $0x8] sm:$0xff]
  %v33 = vld [vmem:[%s0 + $0x10] sm:$0xff]
  %v34 = vld [vmem:[%s0 + $0x18] sm:$0xff]
  %v35 = vld [vmem:[%s0 + $0x20] sm:$0xff]
  %v36 = vld [vmem:[%s0 + $0x28] sm:$0xff]
  %v37 = vld [vmem:[%s0 + $0x30] sm:$0xff]
  %v38 = vld [vmem:[%s0 + $0x38] sm:$0xff]
  %v39 = vld [vmem:[%s0 + $0x40] sm:$0xff]
  %v40 = vld [vmem:[%s0 + $0x48] sm:$0xff]
  %v41 = vld [vmem:[%s0 + $0x50] sm:$0xff]
  %v42 = vld [vmem:[%s0 + $0x58] sm:$0xff]
  %v43 = vld [vmem:[%s0 + $0x60] sm:$0xff]
  %v44 = vld [vmem:[%s0 + $0x68] sm:$0xff]
  %v45 = vld [vmem:[%s0 + $0x70] sm:$0xff]
  %v46 = vld [vmem:[%s0 + $0x78] sm:$0xff]
  %v47 = vld [vmem:[%s0 + $0x80] sm:$0xff]
  %v48 = vld [vmem:[%s0 + $0x88] sm:$0xff]
  %v49 = vld [vmem:[%s0 + $0x90] sm:$0xff]
  %v50 = vld [vmem:[%s0 + $0x98] sm:$0xff]
  %v51 = vld [vmem:[%s0 + $0xa0] sm:$0xff]
  %v52 = vld [vmem:[%s0 + $0xa8] sm:$0xff]
  %v53 = vld [vmem:[%s0 + $0xb0] sm:$0xff]
  %v54 = vld [vmem:[%s0 + $0xb8] sm:$0xff]
  %v55 = vld [vmem:[%s0 + $0xc0] sm:$0xff]
  %v56 = vld [vmem:[%s0 + $0xc8] sm:$0xff]
  %v57 = vld [vmem:[%s0 + $0xd0] sm:$0xff]
  %v58 = vld [vmem:[%s0 + $0xd8] sm:$0xff]
  %v59 = vld [vmem:[%s0 + $0xe0] sm:$0xff]
  %v60 = vld [vmem:[%s0 + $0xe8] sm:$0xff]
  %v61 = vld [vmem:[%s0 + $0xf0] sm:$0xff]
  %v62 = vld [vmem:[%s0 + $0xf8] sm:$0xff]
  %v63 = vpack.c.bf16 %v32, %v31
  %v64 = vpack.c.bf16 %v34, %v33
  %v65 = vpack.c.bf16 %v36, %v35
  %v66 = vpack.c.bf16 %v38, %v37
  %v67 = vpack.c.bf16 %v40, %v39
  %v68 = vpack.c.bf16 %v42, %v41
  %v69 = vpack.c.bf16 %v44, %v43
  %v70 = vpack.c.bf16 %v46, %v45
  %v71 = vpack.c.bf16 %v48, %v47
  %v72 = vpack.c.bf16 %v50, %v49
  %v73 = vpack.c.bf16 %v52, %v51
  %v74 = vpack.c.bf16 %v54, %v53
  %v75 = vpack.c.bf16 %v56, %v55
  %v76 = vpack.c.bf16 %v58, %v57
  %v77 = vpack.c.bf16 %v60, %v59
  %v78 = vpack.c.bf16 %v62, %v61
  %v79 = vld [vmem:[%s2] sm:$0x1]
  %v81 = vlaneseq
  %v82 = vshrl.u32 %v81, 7
  %v83 = vsub.s32 0, %v82
  %v84 = vrot.slane %v79, %v83
  %v90 = vunpack.c.l.b16 %v27
  %v91 = vunpack.c.l.b16 %v28
  %v92 = vunpack.c.l.b16 %v29
  %v93 = vunpack.c.l.b16 %v30
  %v94 = vpack.c.b16 %v91, %v90
  %v95 = vpack.c.b16 %v93, %v92
  %vm98 = vcmask 261120
  %v100 = vsel %vm98, %v63, 0
  %v103 = vsel %vm98, %v64, 0
  %v106 = vsel %vm98, %v65, 0
  %v109 = vsel %vm98, %v66, 0
  %v112 = vsel %vm98, %v67, 0
  %v115 = vsel %vm98, %v68, 0
  %v118 = vsel %vm98, %v69, 0
  %v121 = vsel %vm98, %v70, 0
  %v124 = vsel %vm98, %v71, 0
  %v127 = vsel %vm98, %v72, 0
  %v130 = vsel %vm98, %v73, 0
  %v133 = vsel %vm98, %v74, 0
  %v136 = vsel %vm98, %v75, 0
  %v139 = vsel %vm98, %v76, 0
  %v142 = vsel %vm98, %v77, 0
  %v145 = vsel %vm98, %v78, 0
  %147 = vmatprep.subr.bf16.mxu0 0
  %148 = vmatpush1.bf16.msra.mxu0 0
  %149 = vmatprep.subr.bf16.mxu0 0
  %150 = vmatpush1.bf16.msra.mxu0 0
  %151 = vmatprep.subr.bf16.mxu0 0
  %152 = vmatpush1.bf16.msra.mxu0 0
  %153 = vmatprep.subr.bf16.mxu0 0
  %154 = vmatpush1.bf16.msra.mxu0 0
  %155 = vmatprep.subr.bf16.mxu0 0
  %156 = vmatpush1.bf16.msra.mxu0 0
  %157 = vmatprep.subr.bf16.mxu0 0
  %158 = vmatpush1.bf16.msra.mxu0 0
  %159 = vmatprep.subr.bf16.mxu0 0
  %160 = vmatpush1.bf16.msra.mxu0 %v95
  %161 = vmatprep.subr.bf16.mxu0 0
  %162 = vmatpush1.bf16.msra.mxu0 %v94
  %163 = vmatprep.subr.bf16.mxu0 0
  %164 = vmatpush2.bf16.msra.mxu0 0
  %165 = vmatprep.subr.bf16.mxu0 0
  %166 = vmatpush2.bf16.msra.mxu0 0
  %167 = vmatprep.subr.bf16.mxu0 0
  %168 = vmatpush2.bf16.msra.mxu0 0
  %169 = vmatprep.subr.bf16.mxu0 0
  %170 = vmatpush2.bf16.msra.mxu0 0
  %171 = vmatprep.subr.bf16.mxu0 0
  %172 = vmatpush2.bf16.msra.mxu0 0
  %173 = vmatprep.subr.bf16.mxu0 0
  %174 = vmatpush2.bf16.msra.mxu0 0
  %175 = vmatprep.subr.bf16.mxu0 0
  %176 = vmatpush2.bf16.msra.mxu0 0
  %177 = vmatprep.subr.bf16.mxu0 0
  %178 = vmatpush2.bf16.msra.mxu0 0
  %179 = vmatprep.mubr.bf16.mxu0 0
  %180 = vmatmul.mubr.bf16.gmra.mxu0 %v100
  %v181 = vpop.f32.mrf.mxu0
  %v182 = vadd.f32 %v84, %v181
  %v183 = vpop.f32.mrf.mxu0
  %v184 = vpop.f32.mrf.mxu0
  %v185 = vadd.f32 %v84, %v184
  %v186 = vpop.f32.mrf.mxu0
  %187 = vmatprep.mubr.bf16.mxu0 0
  %188 = vmatmul.mubr.bf16.gmra.mxu0 %v103
  %v189 = vpop.f32.mrf.mxu0
  %v190 = vadd.f32 %v84, %v189
  %v191 = vpop.f32.mrf.mxu0
  %v192 = vpop.f32.mrf.mxu0
  %v193 = vadd.f32 %v84, %v192
  %v194 = vpop.f32.mrf.mxu0
  %195 = vmatprep.mubr.bf16.mxu0 0
  %196 = vmatmul.mubr.bf16.gmra.mxu0 %v106
  %v197 = vpop.f32.mrf.mxu0
  %v198 = vadd.f32 %v84, %v197
  %v199 = vpop.f32.mrf.mxu0
  %v200 = vpop.f32.mrf.mxu0
  %v201 = vadd.f32 %v84, %v200
  %v202 = vpop.f32.mrf.mxu0
  %203 = vmatprep.mubr.bf16.mxu0 0
  %204 = vmatmul.mubr.bf16.gmra.mxu0 %v109
  %v205 = vpop.f32.mrf.mxu0
  %v206 = vadd.f32 %v84, %v205
  %v207 = vpop.f32.mrf.mxu0
  %v208 = vpop.f32.mrf.mxu0
  %v209 = vadd.f32 %v84, %v208
  %v210 = vpop.f32.mrf.mxu0
  %211 = vmatprep.mubr.bf16.mxu0 0
  %212 = vmatmul.mubr.bf16.gmra.mxu0 %v112
  %v213 = vpop.f32.mrf.mxu0
  %v214 = vadd.f32 %v84, %v213
  %v215 = vpop.f32.mrf.mxu0
  %v216 = vpop.f32.mrf.mxu0
  %v217 = vadd.f32 %v84, %v216
  %v218 = vpop.f32.mrf.mxu0
  %219 = vmatprep.mubr.bf16.mxu0 0
  %220 = vmatmul.mubr.bf16.gmra.mxu0 %v115
  %v221 = vpop.f32.mrf.mxu0
  %v222 = vadd.f32 %v84, %v221
  %v223 = vpop.f32.mrf.mxu0
  %v224 = vpop.f32.mrf.mxu0
  %v225 = vadd.f32 %v84, %v224
  %v226 = vpop.f32.mrf.mxu0
  %227 = vmatprep.mubr.bf16.mxu0 0
  %228 = vmatmul.mubr.bf16.gmra.mxu0 %v118
  %v229 = vpop.f32.mrf.mxu0
  %v230 = vadd.f32 %v84, %v229
  %v231 = vpop.f32.mrf.mxu0
  %v232 = vpop.f32.mrf.mxu0
  %v233 = vadd.f32 %v84, %v232
  %v234 = vpop.f32.mrf.mxu0
  %235 = vmatprep.mubr.bf16.mxu0 0
  %236 = vmatmul.mubr.bf16.gmra.mxu0 %v121
  %v237 = vpop.f32.mrf.mxu0
  %v238 = vadd.f32 %v84, %v237
  %v239 = vpop.f32.mrf.mxu0
  %v240 = vpop.f32.mrf.mxu0
  %v241 = vadd.f32 %v84, %v240
  %v242 = vpop.f32.mrf.mxu0
  %243 = vmatprep.mubr.bf16.mxu0 0
  %244 = vmatmul.mubr.bf16.gmra.mxu0 %v124
  %v245 = vpop.f32.mrf.mxu0
  %v246 = vadd.f32 %v84, %v245
  %v247 = vpop.f32.mrf.mxu0
  %v248 = vpop.f32.mrf.mxu0
  %v249 = vadd.f32 %v84, %v248
  %v250 = vpop.f32.mrf.mxu0
  %251 = vmatprep.mubr.bf16.mxu0 0
  %252 = vmatmul.mubr.bf16.gmra.mxu0 %v127
  %v253 = vpop.f32.mrf.mxu0
  %v254 = vadd.f32 %v84, %v253
  %v255 = vpop.f32.mrf.mxu0
  %v256 = vpop.f32.mrf.mxu0
  %v257 = vadd.f32 %v84, %v256
  %v258 = vpop.f32.mrf.mxu0
  %259 = vmatprep.mubr.bf16.mxu0 0
  %260 = vmatmul.mubr.bf16.gmra.mxu0 %v130
  %v261 = vpop.f32.mrf.mxu0
  %v262 = vadd.f32 %v84, %v261
  %v263 = vpop.f32.mrf.mxu0
  %v264 = vpop.f32.mrf.mxu0
  %v265 = vadd.f32 %v84, %v264
  %v266 = vpop.f32.mrf.mxu0
  %267 = vmatprep.mubr.bf16.mxu0 0
  %268 = vmatmul.mubr.bf16.gmra.mxu0 %v133
  %v269 = vpop.f32.mrf.mxu0
  %v270 = vadd.f32 %v84, %v269
  %v271 = vpop.f32.mrf.mxu0
  %v272 = vpop.f32.mrf.mxu0
  %v273 = vadd.f32 %v84, %v272
  %v274 = vpop.f32.mrf.mxu0
  %275 = vmatprep.mubr.bf16.mxu0 0
  %276 = vmatmul.mubr.bf16.gmra.mxu0 %v136
  %v277 = vpop.f32.mrf.mxu0
  %v278 = vadd.f32 %v84, %v277
  %v279 = vpop.f32.mrf.mxu0
  %v280 = vpop.f32.mrf.mxu0
  %v281 = vadd.f32 %v84, %v280
  %v282 = vpop.f32.mrf.mxu0
  %283 = vmatprep.mubr.bf16.mxu0 0
  %284 = vmatmul.mubr.bf16.gmra.mxu0 %v139
  %v285 = vpop.f32.mrf.mxu0
  %v286 = vadd.f32 %v84, %v285
  %v287 = vpop.f32.mrf.mxu0
  %v288 = vpop.f32.mrf.mxu0
  %v289 = vadd.f32 %v84, %v288
  %v290 = vpop.f32.mrf.mxu0
  %291 = vmatprep.mubr.bf16.mxu0 0
  %292 = vmatmul.mubr.bf16.gmra.mxu0 %v142
  %v293 = vpop.f32.mrf.mxu0
  %v294 = vadd.f32 %v84, %v293
  %v295 = vpop.f32.mrf.mxu0
  %v296 = vpop.f32.mrf.mxu0
  %v297 = vadd.f32 %v84, %v296
  %v298 = vpop.f32.mrf.mxu0
  %299 = vmatprep.mubr.bf16.mxu0 0
  %300 = vmatmul.mubr.bf16.gmra.mxu0 %v145
  %v301 = vpop.f32.mrf.mxu0
  %v302 = vadd.f32 %v84, %v301
  %v303 = vpop.f32.mrf.mxu0
  %v304 = vpop.f32.mrf.mxu0
  %v305 = vadd.f32 %v84, %v304
  %v306 = vpop.f32.mrf.mxu0
  %307 = vdwg.mxu0
  %v308 = vmax.f32 %v182, 0.0
  %v309 = vmax.f32 %v185, 0.0
  %v310 = vmax.f32 %v190, 0.0
  %v311 = vmax.f32 %v193, 0.0
  %v312 = vmax.f32 %v198, 0.0
  %v313 = vmax.f32 %v201, 0.0
  %v314 = vmax.f32 %v206, 0.0
  %v315 = vmax.f32 %v209, 0.0
  %v316 = vmax.f32 %v214, 0.0
  %v317 = vmax.f32 %v217, 0.0
  %v318 = vmax.f32 %v222, 0.0
  %v319 = vmax.f32 %v225, 0.0
  %v320 = vmax.f32 %v230, 0.0
  %v321 = vmax.f32 %v233, 0.0
  %v322 = vmax.f32 %v238, 0.0
  %v323 = vmax.f32 %v241, 0.0
  %v324 = vmax.f32 %v246, 0.0
  %v325 = vmax.f32 %v249, 0.0
  %v326 = vmax.f32 %v254, 0.0
  %v327 = vmax.f32 %v257, 0.0
  %v328 = vmax.f32 %v262, 0.0
  %v329 = vmax.f32 %v265, 0.0
  %v330 = vmax.f32 %v270, 0.0
  %v331 = vmax.f32 %v273, 0.0
  %v332 = vmax.f32 %v278, 0.0
  %v333 = vmax.f32 %v281, 0.0
  %v334 = vmax.f32 %v286, 0.0
  %v335 = vmax.f32 %v289, 0.0
  %v336 = vmax.f32 %v294, 0.0
  %v337 = vmax.f32 %v297, 0.0
  %v338 = vmax.f32 %v302, 0.0
  %v339 = vmax.f32 %v305, 0.0
  %v340 = vld [vmem:[%s3] sm:$0xf]
  %v341 = vld [vmem:[%s3 + $0x4] sm:$0xf]
  %v342 = vld [vmem:[%s3 + $0x8] sm:$0xf]
  %v343 = vld [vmem:[%s3 + $0xc] sm:$0xf]
  %v344 = vld [vmem:[%s3 + $0x10] sm:$0xf]
  %v345 = vld [vmem:[%s3 + $0x14] sm:$0xf]
  %v346 = vld [vmem:[%s3 + $0x18] sm:$0xf]
  %v347 = vld [vmem:[%s3 + $0x1c] sm:$0xf]
  %v348 = vld [vmem:[%s3 + $0x20] sm:$0xf]
  %v349 = vld [vmem:[%s3 + $0x24] sm:$0xf]
  %v350 = vld [vmem:[%s3 + $0x28] sm:$0xf]
  %v351 = vld [vmem:[%s3 + $0x2c] sm:$0xf]
  %v352 = vld [vmem:[%s3 + $0x30] sm:$0xf]
  %v353 = vld [vmem:[%s3 + $0x34] sm:$0xf]
  %v354 = vld [vmem:[%s3 + $0x38] sm:$0xf]
  %v355 = vld [vmem:[%s3 + $0x3c] sm:$0xf]
  %v356 = vld [vmem:[%s4] sm:$0x1]
  %v357 = vpack.c.bf16 %v309, %v308
  %v358 = vpack.c.bf16 %v311, %v310
  %v359 = vpack.c.bf16 %v313, %v312
  %v360 = vpack.c.bf16 %v315, %v314
  %v361 = vpack.c.bf16 %v317, %v316
  %v362 = vpack.c.bf16 %v319, %v318
  %v363 = vpack.c.bf16 %v321, %v320
  %v364 = vpack.c.bf16 %v323, %v322
  %v365 = vpack.c.bf16 %v325, %v324
  %v366 = vpack.c.bf16 %v327, %v326
  %v367 = vpack.c.bf16 %v329, %v328
  %v368 = vpack.c.bf16 %v331, %v330
  %v369 = vpack.c.bf16 %v333, %v332
  %v370 = vpack.c.bf16 %v335, %v334
  %v371 = vpack.c.bf16 %v337, %v336
  %v372 = vpack.c.bf16 %v339, %v338
  %v374 = vlaneseq
  %v375 = vshrl.u32 %v374, 7
  %v376 = vsub.s32 0, %v375
  %v377 = vrot.slane %v356, %v376
  %v395 = vunpack.c.l.b16 %v340
  %v396 = vunpack.c.l.b16 %v341
  %v397 = vunpack.c.l.b16 %v342
  %v398 = vunpack.c.l.b16 %v343
  %v399 = vunpack.c.l.b16 %v344
  %v400 = vunpack.c.l.b16 %v345
  %v401 = vunpack.c.l.b16 %v346
  %v402 = vunpack.c.l.b16 %v347
  %v403 = vunpack.c.l.b16 %v348
  %v404 = vunpack.c.l.b16 %v349
  %v405 = vunpack.c.l.b16 %v350
  %v406 = vunpack.c.l.b16 %v351
  %v407 = vunpack.c.l.b16 %v352
  %v408 = vunpack.c.l.b16 %v353
  %v409 = vunpack.c.l.b16 %v354
  %v410 = vunpack.c.l.b16 %v355
  %v411 = vpack.c.b16 %v396, %v395
  %v412 = vpack.c.b16 %v398, %v397
  %v413 = vpack.c.b16 %v400, %v399
  %v414 = vpack.c.b16 %v402, %v401
  %v415 = vpack.c.b16 %v404, %v403
  %v416 = vpack.c.b16 %v406, %v405
  %v417 = vpack.c.b16 %v408, %v407
  %v418 = vpack.c.b16 %v410, %v409
  %427 = vmatprep.subr.bf16.mxu0 0
  %428 = vmatpush1.bf16.msra.mxu0 %v418
  %429 = vmatprep.subr.bf16.mxu0 0
  %430 = vmatpush1.bf16.msra.mxu0 %v417
  %431 = vmatprep.subr.bf16.mxu0 0
  %432 = vmatpush1.bf16.msra.mxu0 %v416
  %433 = vmatprep.subr.bf16.mxu0 0
  %434 = vmatpush1.bf16.msra.mxu0 %v415
  %435 = vmatprep.subr.bf16.mxu0 0
  %436 = vmatpush1.bf16.msra.mxu0 %v414
  %437 = vmatprep.subr.bf16.mxu0 0
  %438 = vmatpush1.bf16.msra.mxu0 %v413
  %439 = vmatprep.subr.bf16.mxu0 0
  %440 = vmatpush1.bf16.msra.mxu0 %v412
  %441 = vmatprep.subr.bf16.mxu0 0
  %442 = vmatpush1.bf16.msra.mxu0 %v411
  %443 = vmatprep.subr.bf16.mxu0 0
  %444 = vmatpush2.bf16.msra.mxu0 0
  %445 = vmatprep.subr.bf16.mxu0 0
  %446 = vmatpush2.bf16.msra.mxu0 0
  %447 = vmatprep.subr.bf16.mxu0 0
  %448 = vmatpush2.bf16.msra.mxu0 0
  %449 = vmatprep.subr.bf16.mxu0 0
  %450 = vmatpush2.bf16.msra.mxu0 0
  %451 = vmatprep.subr.bf16.mxu0 0
  %452 = vmatpush2.bf16.msra.mxu0 0
  %453 = vmatprep.subr.bf16.mxu0 0
  %454 = vmatpush2.bf16.msra.mxu0 0
  %455 = vmatprep.subr.bf16.mxu0 0
  %456 = vmatpush2.bf16.msra.mxu0 0
  %457 = vmatprep.subr.bf16.mxu0 0
  %458 = vmatpush2.bf16.msra.mxu0 0
  %459 = vmatprep.mubr.bf16.mxu0 0
  %460 = vmatmul.mubr.bf16.gmra.mxu0 %v357
  %v461 = vpop.f32.mrf.mxu0
  %v462 = vadd.f32 %v377, %v461
  %v463 = vpop.f32.mrf.mxu0
  %v464 = vpop.f32.mrf.mxu0
  %v465 = vadd.f32 %v377, %v464
  %v466 = vpop.f32.mrf.mxu0
  %467 = vmatprep.mubr.bf16.mxu0 0
  %468 = vmatmul.mubr.bf16.gmra.mxu0 %v358
  %v469 = vpop.f32.mrf.mxu0
  %v470 = vadd.f32 %v377, %v469
  %v471 = vpop.f32.mrf.mxu0
  %v472 = vpop.f32.mrf.mxu0
  %v473 = vadd.f32 %v377, %v472
  %v474 = vpop.f32.mrf.mxu0
  %475 = vmatprep.mubr.bf16.mxu0 0
  %476 = vmatmul.mubr.bf16.gmra.mxu0 %v359
  %v477 = vpop.f32.mrf.mxu0
  %v478 = vadd.f32 %v377, %v477
  %v479 = vpop.f32.mrf.mxu0
  %v480 = vpop.f32.mrf.mxu0
  %v481 = vadd.f32 %v377, %v480
  %v482 = vpop.f32.mrf.mxu0
  %483 = vmatprep.mubr.bf16.mxu0 0
  %484 = vmatmul.mubr.bf16.gmra.mxu0 %v360
  %v485 = vpop.f32.mrf.mxu0
  %v486 = vadd.f32 %v377, %v485
  %v487 = vpop.f32.mrf.mxu0
  %v488 = vpop.f32.mrf.mxu0
  %v489 = vadd.f32 %v377, %v488
  %v490 = vpop.f32.mrf.mxu0
  %491 = vmatprep.mubr.bf16.mxu0 0
  %492 = vmatmul.mubr.bf16.gmra.mxu0 %v361
  %v493 = vpop.f32.mrf.mxu0
  %v494 = vadd.f32 %v377, %v493
  %v495 = vpop.f32.mrf.mxu0
  %v496 = vpop.f32.mrf.mxu0
  %v497 = vadd.f32 %v377, %v496
  %v498 = vpop.f32.mrf.mxu0
  %499 = vmatprep.mubr.bf16.mxu0 0
  %500 = vmatmul.mubr.bf16.gmra.mxu0 %v362
  %v501 = vpop.f32.mrf.mxu0
  %v502 = vadd.f32 %v377, %v501
  %v503 = vpop.f32.mrf.mxu0
  %v504 = vpop.f32.mrf.mxu0
  %v505 = vadd.f32 %v377, %v504
  %v506 = vpop.f32.mrf.mxu0
  %507 = vmatprep.mubr.bf16.mxu0 0
  %508 = vmatmul.mubr.bf16.gmra.mxu0 %v363
  %v509 = vpop.f32.mrf.mxu0
  %v510 = vadd.f32 %v377, %v509
  %v511 = vpop.f32.mrf.mxu0
  %v512 = vpop.f32.mrf.mxu0
  %v513 = vadd.f32 %v377, %v512
  %v514 = vpop.f32.mrf.mxu0
  %515 = vmatprep.mubr.bf16.mxu0 0
  %516 = vmatmul.mubr.bf16.gmra.mxu0 %v364
  %v517 = vpop.f32.mrf.mxu0
  %v518 = vadd.f32 %v377, %v517
  %v519 = vpop.f32.mrf.mxu0
  %v520 = vpop.f32.mrf.mxu0
  %v521 = vadd.f32 %v377, %v520
  %v522 = vpop.f32.mrf.mxu0
  %523 = vmatprep.mubr.bf16.mxu0 0
  %524 = vmatmul.mubr.bf16.gmra.mxu0 %v365
  %v525 = vpop.f32.mrf.mxu0
  %v526 = vadd.f32 %v377, %v525
  %v527 = vpop.f32.mrf.mxu0
  %v528 = vpop.f32.mrf.mxu0
  %v529 = vadd.f32 %v377, %v528
  %v530 = vpop.f32.mrf.mxu0
  %531 = vmatprep.mubr.bf16.mxu0 0
  %532 = vmatmul.mubr.bf16.gmra.mxu0 %v366
  %v533 = vpop.f32.mrf.mxu0
  %v534 = vadd.f32 %v377, %v533
  %v535 = vpop.f32.mrf.mxu0
  %v536 = vpop.f32.mrf.mxu0
  %v537 = vadd.f32 %v377, %v536
  %v538 = vpop.f32.mrf.mxu0
  %539 = vmatprep.mubr.bf16.mxu0 0
  %540 = vmatmul.mubr.bf16.gmra.mxu0 %v367
  %v541 = vpop.f32.mrf.mxu0
  %v542 = vadd.f32 %v377, %v541
  %v543 = vpop.f32.mrf.mxu0
  %v544 = vpop.f32.mrf.mxu0
  %v545 = vadd.f32 %v377, %v544
  %v546 = vpop.f32.mrf.mxu0
  %547 = vmatprep.mubr.bf16.mxu0 0
  %548 = vmatmul.mubr.bf16.gmra.mxu0 %v368
  %v549 = vpop.f32.mrf.mxu0
  %v550 = vadd.f32 %v377, %v549
  %v551 = vpop.f32.mrf.mxu0
  %v552 = vpop.f32.mrf.mxu0
  %v553 = vadd.f32 %v377, %v552
  %v554 = vpop.f32.mrf.mxu0
  %555 = vmatprep.mubr.bf16.mxu0 0
  %556 = vmatmul.mubr.bf16.gmra.mxu0 %v369
  %v557 = vpop.f32.mrf.mxu0
  %v558 = vadd.f32 %v377, %v557
  %v559 = vpop.f32.mrf.mxu0
  %v560 = vpop.f32.mrf.mxu0
  %v561 = vadd.f32 %v377, %v560
  %v562 = vpop.f32.mrf.mxu0
  %563 = vmatprep.mubr.bf16.mxu0 0
  %564 = vmatmul.mubr.bf16.gmra.mxu0 %v370
  %v565 = vpop.f32.mrf.mxu0
  %v566 = vadd.f32 %v377, %v565
  %v567 = vpop.f32.mrf.mxu0
  %v568 = vpop.f32.mrf.mxu0
  %v569 = vadd.f32 %v377, %v568
  %v570 = vpop.f32.mrf.mxu0
  %571 = vmatprep.mubr.bf16.mxu0 0
  %572 = vmatmul.mubr.bf16.gmra.mxu0 %v371
  %v573 = vpop.f32.mrf.mxu0
  %v574 = vadd.f32 %v377, %v573
  %v575 = vpop.f32.mrf.mxu0
  %v576 = vpop.f32.mrf.mxu0
  %v577 = vadd.f32 %v377, %v576
  %v578 = vpop.f32.mrf.mxu0
  %579 = vmatprep.mubr.bf16.mxu0 0
  %580 = vmatmul.mubr.bf16.gmra.mxu0 %v372
  %v581 = vpop.f32.mrf.mxu0
  %v582 = vadd.f32 %v377, %v581
  %v583 = vpop.f32.mrf.mxu0
  %v584 = vpop.f32.mrf.mxu0
  %v585 = vadd.f32 %v377, %v584
  %v586 = vpop.f32.mrf.mxu0
  %587 = vdwg.mxu0
  %v588 = vmax.f32 %v462, 0.0
  %v589 = vmax.f32 %v465, 0.0
  %v590 = vmax.f32 %v470, 0.0
  %v591 = vmax.f32 %v473, 0.0
  %v592 = vmax.f32 %v478, 0.0
  %v593 = vmax.f32 %v481, 0.0
  %v594 = vmax.f32 %v486, 0.0
  %v595 = vmax.f32 %v489, 0.0
  %v596 = vmax.f32 %v494, 0.0
  %v597 = vmax.f32 %v497, 0.0
  %v598 = vmax.f32 %v502, 0.0
  %v599 = vmax.f32 %v505, 0.0
  %v600 = vmax.f32 %v510, 0.0
  %v601 = vmax.f32 %v513, 0.0
  %v602 = vmax.f32 %v518, 0.0
  %v603 = vmax.f32 %v521, 0.0
  %v604 = vmax.f32 %v526, 0.0
  %v605 = vmax.f32 %v529, 0.0
  %v606 = vmax.f32 %v534, 0.0
  %v607 = vmax.f32 %v537, 0.0
  %v608 = vmax.f32 %v542, 0.0
  %v609 = vmax.f32 %v545, 0.0
  %v610 = vmax.f32 %v550, 0.0
  %v611 = vmax.f32 %v553, 0.0
  %v612 = vmax.f32 %v558, 0.0
  %v613 = vmax.f32 %v561, 0.0
  %v614 = vmax.f32 %v566, 0.0
  %v615 = vmax.f32 %v569, 0.0
  %v616 = vmax.f32 %v574, 0.0
  %v617 = vmax.f32 %v577, 0.0
  %v618 = vmax.f32 %v582, 0.0
  %v619 = vmax.f32 %v585, 0.0
  %v620 = vpack.c.bf16 %v589, %v588
  %v621 = vpack.c.bf16 %v591, %v590
  %v622 = vpack.c.bf16 %v593, %v592
  %v623 = vpack.c.bf16 %v595, %v594
  %v624 = vpack.c.bf16 %v597, %v596
  %v625 = vpack.c.bf16 %v599, %v598
  %v626 = vpack.c.bf16 %v601, %v600
  %v627 = vpack.c.bf16 %v603, %v602
  %v628 = vpack.c.bf16 %v605, %v604
  %v629 = vpack.c.bf16 %v607, %v606
  %v630 = vpack.c.bf16 %v609, %v608
  %v631 = vpack.c.bf16 %v611, %v610
  %v632 = vpack.c.bf16 %v613, %v612
  %v633 = vpack.c.bf16 %v615, %v614
  %v634 = vpack.c.bf16 %v617, %v616
  %v635 = vpack.c.bf16 %v619, %v618
  %636 = vmatprep.subr.bf16.mxu0 0
  %637 = vmatpush1.bf16.msra.mxu0 %v418
  %638 = vmatprep.subr.bf16.mxu0 0
  %639 = vmatpush1.bf16.msra.mxu0 %v417
  %640 = vmatprep.subr.bf16.mxu0 0
  %641 = vmatpush1.bf16.msra.mxu0 %v416
  %642 = vmatprep.subr.bf16.mxu0 0
  %643 = vmatpush1.bf16.msra.mxu0 %v415
  %644 = vmatprep.subr.bf16.mxu0 0
  %645 = vmatpush1.bf16.msra.mxu0 %v414
  %646 = vmatprep.subr.bf16.mxu0 0
  %647 = vmatpush1.bf16.msra.mxu0 %v413
  %648 = vmatprep.subr.bf16.mxu0 0
  %649 = vmatpush1.bf16.msra.mxu0 %v412
  %650 = vmatprep.subr.bf16.mxu0 0
  %651 = vmatpush1.bf16.msra.mxu0 %v411
  %652 = vmatprep.subr.bf16.mxu0 0
  %653 = vmatpush2.bf16.msra.mxu0 0
  %654 = vmatprep.subr.bf16.mxu0 0
  %655 = vmatpush2.bf16.msra.mxu0 0
  %656 = vmatprep.subr.bf16.mxu0 0
  %657 = vmatpush2.bf16.msra.mxu0 0
  %658 = vmatprep.subr.bf16.mxu0 0
  %659 = vmatpush2.bf16.msra.mxu0 0
  %660 = vmatprep.subr.bf16.mxu0 0
  %661 = vmatpush2.bf16.msra.mxu0 0
  %662 = vmatprep.subr.bf16.mxu0 0
  %663 = vmatpush2.bf16.msra.mxu0 0
  %664 = vmatprep.subr.bf16.mxu0 0
  %665 = vmatpush2.bf16.msra.mxu0 0
  %666 = vmatprep.subr.bf16.mxu0 0
  %667 = vmatpush2.bf16.msra.mxu0 0
  %668 = vmatprep.mubr.bf16.mxu0 0
  %669 = vmatmul.mubr.bf16.gmra.mxu0 %v620
  %v670 = vpop.f32.mrf.mxu0
  %v671 = vadd.f32 %v377, %v670
  %v672 = vpop.f32.mrf.mxu0
  %v673 = vpop.f32.mrf.mxu0
  %v674 = vadd.f32 %v377, %v673
  %v675 = vpop.f32.mrf.mxu0
  %676 = vmatprep.mubr.bf16.mxu0 0
  %677 = vmatmul.mubr.bf16.gmra.mxu0 %v621
  %v678 = vpop.f32.mrf.mxu0
  %v679 = vadd.f32 %v377, %v678
  %v680 = vpop.f32.mrf.mxu0
  %v681 = vpop.f32.mrf.mxu0
  %v682 = vadd.f32 %v377, %v681
  %v683 = vpop.f32.mrf.mxu0
  %684 = vmatprep.mubr.bf16.mxu0 0
  %685 = vmatmul.mubr.bf16.gmra.mxu0 %v622
  %v686 = vpop.f32.mrf.mxu0
  %v687 = vadd.f32 %v377, %v686
  %v688 = vpop.f32.mrf.mxu0
  %v689 = vpop.f32.mrf.mxu0
  %v690 = vadd.f32 %v377, %v689
  %v691 = vpop.f32.mrf.mxu0
  %692 = vmatprep.mubr.bf16.mxu0 0
  %693 = vmatmul.mubr.bf16.gmra.mxu0 %v623
  %v694 = vpop.f32.mrf.mxu0
  %v695 = vadd.f32 %v377, %v694
  %v696 = vpop.f32.mrf.mxu0
  %v697 = vpop.f32.mrf.mxu0
  %v698 = vadd.f32 %v377, %v697
  %v699 = vpop.f32.mrf.mxu0
  %700 = vmatprep.mubr.bf16.mxu0 0
  %701 = vmatmul.mubr.bf16.gmra.mxu0 %v624
  %v702 = vpop.f32.mrf.mxu0
  %v703 = vadd.f32 %v377, %v702
  %v704 = vpop.f32.mrf.mxu0
  %v705 = vpop.f32.mrf.mxu0
  %v706 = vadd.f32 %v377, %v705
  %v707 = vpop.f32.mrf.mxu0
  %708 = vmatprep.mubr.bf16.mxu0 0
  %709 = vmatmul.mubr.bf16.gmra.mxu0 %v625
  %v710 = vpop.f32.mrf.mxu0
  %v711 = vadd.f32 %v377, %v710
  %v712 = vpop.f32.mrf.mxu0
  %v713 = vpop.f32.mrf.mxu0
  %v714 = vadd.f32 %v377, %v713
  %v715 = vpop.f32.mrf.mxu0
  %716 = vmatprep.mubr.bf16.mxu0 0
  %717 = vmatmul.mubr.bf16.gmra.mxu0 %v626
  %v718 = vpop.f32.mrf.mxu0
  %v719 = vadd.f32 %v377, %v718
  %v720 = vpop.f32.mrf.mxu0
  %v721 = vpop.f32.mrf.mxu0
  %v722 = vadd.f32 %v377, %v721
  %v723 = vpop.f32.mrf.mxu0
  %724 = vmatprep.mubr.bf16.mxu0 0
  %725 = vmatmul.mubr.bf16.gmra.mxu0 %v627
  %v726 = vpop.f32.mrf.mxu0
  %v727 = vadd.f32 %v377, %v726
  %v728 = vpop.f32.mrf.mxu0
  %v729 = vpop.f32.mrf.mxu0
  %v730 = vadd.f32 %v377, %v729
  %v731 = vpop.f32.mrf.mxu0
  %732 = vmatprep.mubr.bf16.mxu0 0
  %733 = vmatmul.mubr.bf16.gmra.mxu0 %v628
  %v734 = vpop.f32.mrf.mxu0
  %v735 = vadd.f32 %v377, %v734
  %v736 = vpop.f32.mrf.mxu0
  %v737 = vpop.f32.mrf.mxu0
  %v738 = vadd.f32 %v377, %v737
  %v739 = vpop.f32.mrf.mxu0
  %740 = vmatprep.mubr.bf16.mxu0 0
  %741 = vmatmul.mubr.bf16.gmra.mxu0 %v629
  %v742 = vpop.f32.mrf.mxu0
  %v743 = vadd.f32 %v377, %v742
  %v744 = vpop.f32.mrf.mxu0
  %v745 = vpop.f32.mrf.mxu0
  %v746 = vadd.f32 %v377, %v745
  %v747 = vpop.f32.mrf.mxu0
  %748 = vmatprep.mubr.bf16.mxu0 0
  %749 = vmatmul.mubr.bf16.gmra.mxu0 %v630
  %v750 = vpop.f32.mrf.mxu0
  %v751 = vadd.f32 %v377, %v750
  %v752 = vpop.f32.mrf.mxu0
  %v753 = vpop.f32.mrf.mxu0
  %v754 = vadd.f32 %v377, %v753
  %v755 = vpop.f32.mrf.mxu0
  %756 = vmatprep.mubr.bf16.mxu0 0
  %757 = vmatmul.mubr.bf16.gmra.mxu0 %v631
  %v758 = vpop.f32.mrf.mxu0
  %v759 = vadd.f32 %v377, %v758
  %v760 = vpop.f32.mrf.mxu0
  %v761 = vpop.f32.mrf.mxu0
  %v762 = vadd.f32 %v377, %v761
  %v763 = vpop.f32.mrf.mxu0
  %764 = vmatprep.mubr.bf16.mxu0 0
  %765 = vmatmul.mubr.bf16.gmra.mxu0 %v632
  %v766 = vpop.f32.mrf.mxu0
  %v767 = vadd.f32 %v377, %v766
  %v768 = vpop.f32.mrf.mxu0
  %v769 = vpop.f32.mrf.mxu0
  %v770 = vadd.f32 %v377, %v769
  %v771 = vpop.f32.mrf.mxu0
  %772 = vmatprep.mubr.bf16.mxu0 0
  %773 = vmatmul.mubr.bf16.gmra.mxu0 %v633
  %v774 = vpop.f32.mrf.mxu0
  %v775 = vadd.f32 %v377, %v774
  %v776 = vpop.f32.mrf.mxu0
  %v777 = vpop.f32.mrf.mxu0
  %v778 = vadd.f32 %v377, %v777
  %v779 = vpop.f32.mrf.mxu0
  %780 = vmatprep.mubr.bf16.mxu0 0
  %781 = vmatmul.mubr.bf16.gmra.mxu0 %v634
  %v782 = vpop.f32.mrf.mxu0
  %v783 = vadd.f32 %v377, %v782
  %v784 = vpop.f32.mrf.mxu0
  %v785 = vpop.f32.mrf.mxu0
  %v786 = vadd.f32 %v377, %v785
  %v787 = vpop.f32.mrf.mxu0
  %788 = vmatprep.mubr.bf16.mxu0 0
  %789 = vmatmul.mubr.bf16.gmra.mxu0 %v635
  %v790 = vpop.f32.mrf.mxu0
  %v791 = vadd.f32 %v377, %v790
  %v792 = vpop.f32.mrf.mxu0
  %v793 = vpop.f32.mrf.mxu0
  %v794 = vadd.f32 %v377, %v793
  %v795 = vpop.f32.mrf.mxu0
  %796 = vdwg.mxu0
  %v797 = vmax.f32 %v671, 0.0
  %v798 = vmax.f32 %v674, 0.0
  %v799 = vmax.f32 %v679, 0.0
  %v800 = vmax.f32 %v682, 0.0
  %v801 = vmax.f32 %v687, 0.0
  %v802 = vmax.f32 %v690, 0.0
  %v803 = vmax.f32 %v695, 0.0
  %v804 = vmax.f32 %v698, 0.0
  %v805 = vmax.f32 %v703, 0.0
  %v806 = vmax.f32 %v706, 0.0
  %v807 = vmax.f32 %v711, 0.0
  %v808 = vmax.f32 %v714, 0.0
  %v809 = vmax.f32 %v719, 0.0
  %v810 = vmax.f32 %v722, 0.0
  %v811 = vmax.f32 %v727, 0.0
  %v812 = vmax.f32 %v730, 0.0
  %v813 = vmax.f32 %v735, 0.0
  %v814 = vmax.f32 %v738, 0.0
  %v815 = vmax.f32 %v743, 0.0
  %v816 = vmax.f32 %v746, 0.0
  %v817 = vmax.f32 %v751, 0.0
  %v818 = vmax.f32 %v754, 0.0
  %v819 = vmax.f32 %v759, 0.0
  %v820 = vmax.f32 %v762, 0.0
  %v821 = vmax.f32 %v767, 0.0
  %v822 = vmax.f32 %v770, 0.0
  %v823 = vmax.f32 %v775, 0.0
  %v824 = vmax.f32 %v778, 0.0
  %v825 = vmax.f32 %v783, 0.0
  %v826 = vmax.f32 %v786, 0.0
  %v827 = vmax.f32 %v791, 0.0
  %v828 = vmax.f32 %v794, 0.0
  %v829 = vpack.c.bf16 %v798, %v797
  %v830 = vpack.c.bf16 %v800, %v799
  %v831 = vpack.c.bf16 %v802, %v801
  %v832 = vpack.c.bf16 %v804, %v803
  %v833 = vpack.c.bf16 %v806, %v805
  %v834 = vpack.c.bf16 %v808, %v807
  %v835 = vpack.c.bf16 %v810, %v809
  %v836 = vpack.c.bf16 %v812, %v811
  %v837 = vpack.c.bf16 %v814, %v813
  %v838 = vpack.c.bf16 %v816, %v815
  %v839 = vpack.c.bf16 %v818, %v817
  %v840 = vpack.c.bf16 %v820, %v819
  %v841 = vpack.c.bf16 %v822, %v821
  %v842 = vpack.c.bf16 %v824, %v823
  %v843 = vpack.c.bf16 %v826, %v825
  %v844 = vpack.c.bf16 %v828, %v827
  %v845 = vld [vmem:[%s5] sm:$0xf]
  %v846 = vld [vmem:[%s5 + $0x4] sm:$0xf]
  %v847 = vld [vmem:[%s5 + $0x8] sm:$0xf]
  %v848 = vld [vmem:[%s5 + $0xc] sm:$0xf]
  %v849 = vld [vmem:[%s5 + $0x10] sm:$0xf]
  %v850 = vld [vmem:[%s5 + $0x14] sm:$0xf]
  %v851 = vld [vmem:[%s5 + $0x18] sm:$0xf]
  %v852 = vld [vmem:[%s5 + $0x1c] sm:$0xf]
  %v853 = vld [vmem:[%s5 + $0x20] sm:$0xf]
  %v854 = vld [vmem:[%s5 + $0x24] sm:$0xf]
  %v855 = vld [vmem:[%s5 + $0x28] sm:$0xf]
  %v856 = vld [vmem:[%s5 + $0x2c] sm:$0xf]
  %v857 = vld [vmem:[%s5 + $0x30] sm:$0xf]
  %v858 = vld [vmem:[%s5 + $0x34] sm:$0xf]
  %v859 = vld [vmem:[%s5 + $0x38] sm:$0xf]
  %v860 = vld [vmem:[%s5 + $0x3c] sm:$0xf]
  %v861 = vld [vmem:[%s6] sm:$0x1]
  %v863 = vlaneseq
  %v864 = vshrl.u32 %v863, 7
  %v865 = vsub.s32 0, %v864
  %v866 = vrot.slane %v861, %v865
  %v884 = vunpack.c.l.b16 %v845
  %v885 = vunpack.c.l.b16 %v846
  %v886 = vunpack.c.l.b16 %v847
  %v887 = vunpack.c.l.b16 %v848
  %v888 = vunpack.c.l.b16 %v849
  %v889 = vunpack.c.l.b16 %v850
  %v890 = vunpack.c.l.b16 %v851
  %v891 = vunpack.c.l.b16 %v852
  %v892 = vunpack.c.l.b16 %v853
  %v893 = vunpack.c.l.b16 %v854
  %v894 = vunpack.c.l.b16 %v855
  %v895 = vunpack.c.l.b16 %v856
  %v896 = vunpack.c.l.b16 %v857
  %v897 = vunpack.c.l.b16 %v858
  %v898 = vunpack.c.l.b16 %v859
  %v899 = vunpack.c.l.b16 %v860
  %v900 = vpack.c.b16 %v885, %v884
  %v901 = vpack.c.b16 %v887, %v886
  %v902 = vpack.c.b16 %v889, %v888
  %v903 = vpack.c.b16 %v891, %v890
  %v904 = vpack.c.b16 %v893, %v892
  %v905 = vpack.c.b16 %v895, %v894
  %v906 = vpack.c.b16 %v897, %v896
  %v907 = vpack.c.b16 %v899, %v898
  %916 = vmatprep.subr.bf16.mxu0 0
  %917 = vmatpush1.bf16.msra.mxu0 %v907
  %918 = vmatprep.subr.bf16.mxu0 0
  %919 = vmatpush1.bf16.msra.mxu0 %v906
  %920 = vmatprep.subr.bf16.mxu0 0
  %921 = vmatpush1.bf16.msra.mxu0 %v905
  %922 = vmatprep.subr.bf16.mxu0 0
  %923 = vmatpush1.bf16.msra.mxu0 %v904
  %924 = vmatprep.subr.bf16.mxu0 0
  %925 = vmatpush1.bf16.msra.mxu0 %v903
  %926 = vmatprep.subr.bf16.mxu0 0
  %927 = vmatpush1.bf16.msra.mxu0 %v902
  %928 = vmatprep.subr.bf16.mxu0 0
  %929 = vmatpush1.bf16.msra.mxu0 %v901
  %930 = vmatprep.subr.bf16.mxu0 0
  %931 = vmatpush1.bf16.msra.mxu0 %v900
  %932 = vmatprep.subr.bf16.mxu0 0
  %933 = vmatpush2.bf16.msra.mxu0 0
  %934 = vmatprep.subr.bf16.mxu0 0
  %935 = vmatpush2.bf16.msra.mxu0 0
  %936 = vmatprep.subr.bf16.mxu0 0
  %937 = vmatpush2.bf16.msra.mxu0 0
  %938 = vmatprep.subr.bf16.mxu0 0
  %939 = vmatpush2.bf16.msra.mxu0 0
  %940 = vmatprep.subr.bf16.mxu0 0
  %941 = vmatpush2.bf16.msra.mxu0 0
  %942 = vmatprep.subr.bf16.mxu0 0
  %943 = vmatpush2.bf16.msra.mxu0 0
  %944 = vmatprep.subr.bf16.mxu0 0
  %945 = vmatpush2.bf16.msra.mxu0 0
  %946 = vmatprep.subr.bf16.mxu0 0
  %947 = vmatpush2.bf16.msra.mxu0 0
  %948 = vmatprep.mubr.bf16.mxu0 0
  %949 = vmatmul.mubr.bf16.gmra.mxu0 %v829
  %v950 = vpop.f32.mrf.mxu0
  %v951 = vadd.f32 %v866, %v950
  %v952 = vpop.f32.mrf.mxu0
  %v953 = vpop.f32.mrf.mxu0
  %v954 = vadd.f32 %v866, %v953
  %v955 = vpop.f32.mrf.mxu0
  %956 = vmatprep.mubr.bf16.mxu0 0
  %957 = vmatmul.mubr.bf16.gmra.mxu0 %v830
  %v958 = vpop.f32.mrf.mxu0
  %v959 = vadd.f32 %v866, %v958
  %v960 = vpop.f32.mrf.mxu0
  %v961 = vpop.f32.mrf.mxu0
  %v962 = vadd.f32 %v866, %v961
  %v963 = vpop.f32.mrf.mxu0
  %964 = vmatprep.mubr.bf16.mxu0 0
  %965 = vmatmul.mubr.bf16.gmra.mxu0 %v831
  %v966 = vpop.f32.mrf.mxu0
  %v967 = vadd.f32 %v866, %v966
  %v968 = vpop.f32.mrf.mxu0
  %v969 = vpop.f32.mrf.mxu0
  %v970 = vadd.f32 %v866, %v969
  %v971 = vpop.f32.mrf.mxu0
  %972 = vmatprep.mubr.bf16.mxu0 0
  %973 = vmatmul.mubr.bf16.gmra.mxu0 %v832
  %v974 = vpop.f32.mrf.mxu0
  %v975 = vadd.f32 %v866, %v974
  %v976 = vpop.f32.mrf.mxu0
  %v977 = vpop.f32.mrf.mxu0
  %v978 = vadd.f32 %v866, %v977
  %v979 = vpop.f32.mrf.mxu0
  %980 = vmatprep.mubr.bf16.mxu0 0
  %981 = vmatmul.mubr.bf16.gmra.mxu0 %v833
  %v982 = vpop.f32.mrf.mxu0
  %v983 = vadd.f32 %v866, %v982
  %v984 = vpop.f32.mrf.mxu0
  %v985 = vpop.f32.mrf.mxu0
  %v986 = vadd.f32 %v866, %v985
  %v987 = vpop.f32.mrf.mxu0
  %988 = vmatprep.mubr.bf16.mxu0 0
  %989 = vmatmul.mubr.bf16.gmra.mxu0 %v834
  %v990 = vpop.f32.mrf.mxu0
  %v991 = vadd.f32 %v866, %v990
  %v992 = vpop.f32.mrf.mxu0
  %v993 = vpop.f32.mrf.mxu0
  %v994 = vadd.f32 %v866, %v993
  %v995 = vpop.f32.mrf.mxu0
  %996 = vmatprep.mubr.bf16.mxu0 0
  %997 = vmatmul.mubr.bf16.gmra.mxu0 %v835
  %v998 = vpop.f32.mrf.mxu0
  %v999 = vadd.f32 %v866, %v998
  %v1000 = vpop.f32.mrf.mxu0
  %v1001 = vpop.f32.mrf.mxu0
  %v1002 = vadd.f32 %v866, %v1001
  %v1003 = vpop.f32.mrf.mxu0
  %1004 = vmatprep.mubr.bf16.mxu0 0
  %1005 = vmatmul.mubr.bf16.gmra.mxu0 %v836
  %v1006 = vpop.f32.mrf.mxu0
  %v1007 = vadd.f32 %v866, %v1006
  %v1008 = vpop.f32.mrf.mxu0
  %v1009 = vpop.f32.mrf.mxu0
  %v1010 = vadd.f32 %v866, %v1009
  %v1011 = vpop.f32.mrf.mxu0
  %1012 = vmatprep.mubr.bf16.mxu0 0
  %1013 = vmatmul.mubr.bf16.gmra.mxu0 %v837
  %v1014 = vpop.f32.mrf.mxu0
  %v1015 = vadd.f32 %v866, %v1014
  %v1016 = vpop.f32.mrf.mxu0
  %v1017 = vpop.f32.mrf.mxu0
  %v1018 = vadd.f32 %v866, %v1017
  %v1019 = vpop.f32.mrf.mxu0
  %1020 = vmatprep.mubr.bf16.mxu0 0
  %1021 = vmatmul.mubr.bf16.gmra.mxu0 %v838
  %v1022 = vpop.f32.mrf.mxu0
  %v1023 = vadd.f32 %v866, %v1022
  %v1024 = vpop.f32.mrf.mxu0
  %v1025 = vpop.f32.mrf.mxu0
  %v1026 = vadd.f32 %v866, %v1025
  %v1027 = vpop.f32.mrf.mxu0
  %1028 = vmatprep.mubr.bf16.mxu0 0
  %1029 = vmatmul.mubr.bf16.gmra.mxu0 %v839
  %v1030 = vpop.f32.mrf.mxu0
  %v1031 = vadd.f32 %v866, %v1030
  %v1032 = vpop.f32.mrf.mxu0
  %v1033 = vpop.f32.mrf.mxu0
  %v1034 = vadd.f32 %v866, %v1033
  %v1035 = vpop.f32.mrf.mxu0
  %1036 = vmatprep.mubr.bf16.mxu0 0
  %1037 = vmatmul.mubr.bf16.gmra.mxu0 %v840
  %v1038 = vpop.f32.mrf.mxu0
  %v1039 = vadd.f32 %v866, %v1038
  %v1040 = vpop.f32.mrf.mxu0
  %v1041 = vpop.f32.mrf.mxu0
  %v1042 = vadd.f32 %v866, %v1041
  %v1043 = vpop.f32.mrf.mxu0
  %1044 = vmatprep.mubr.bf16.mxu0 0
  %1045 = vmatmul.mubr.bf16.gmra.mxu0 %v841
  %v1046 = vpop.f32.mrf.mxu0
  %v1047 = vadd.f32 %v866, %v1046
  %v1048 = vpop.f32.mrf.mxu0
  %v1049 = vpop.f32.mrf.mxu0
  %v1050 = vadd.f32 %v866, %v1049
  %v1051 = vpop.f32.mrf.mxu0
  %1052 = vmatprep.mubr.bf16.mxu0 0
  %1053 = vmatmul.mubr.bf16.gmra.mxu0 %v842
  %v1054 = vpop.f32.mrf.mxu0
  %v1055 = vadd.f32 %v866, %v1054
  %v1056 = vpop.f32.mrf.mxu0
  %v1057 = vpop.f32.mrf.mxu0
  %v1058 = vadd.f32 %v866, %v1057
  %v1059 = vpop.f32.mrf.mxu0
  %1060 = vmatprep.mubr.bf16.mxu0 0
  %1061 = vmatmul.mubr.bf16.gmra.mxu0 %v843
  %v1062 = vpop.f32.mrf.mxu0
  %v1063 = vadd.f32 %v866, %v1062
  %v1064 = vpop.f32.mrf.mxu0
  %v1065 = vpop.f32.mrf.mxu0
  %v1066 = vadd.f32 %v866, %v1065
  %v1067 = vpop.f32.mrf.mxu0
  %1068 = vmatprep.mubr.bf16.mxu0 0
  %1069 = vmatmul.mubr.bf16.gmra.mxu0 %v844
  %v1070 = vpop.f32.mrf.mxu0
  %v1071 = vadd.f32 %v866, %v1070
  %v1072 = vpop.f32.mrf.mxu0
  %v1073 = vpop.f32.mrf.mxu0
  %v1074 = vadd.f32 %v866, %v1073
  %v1075 = vpop.f32.mrf.mxu0
  %1076 = vdwg.mxu0
  %vm1077 = vcmask 64512
  %1078 = vst.msk [vmem:[%s7] sm:$0xff] %vm1077, %v951
  %1079 = vst.msk [vmem:[%s7 + $0x8] sm:$0xff] %vm1077, %v954
  %1080 = vst.msk [vmem:[%s7 + $0x10] sm:$0xff] %vm1077, %v959
  %1081 = vst.msk [vmem:[%s7 + $0x18] sm:$0xff] %vm1077, %v962
  %1082 = vst.msk [vmem:[%s7 + $0x20] sm:$0xff] %vm1077, %v967
  %1083 = vst.msk [vmem:[%s7 + $0x28] sm:$0xff] %vm1077, %v970
  %1084 = vst.msk [vmem:[%s7 + $0x30] sm:$0xff] %vm1077, %v975
  %1085 = vst.msk [vmem:[%s7 + $0x38] sm:$0xff] %vm1077, %v978
  %1086 = vst.msk [vmem:[%s7 + $0x40] sm:$0xff] %vm1077, %v983
  %1087 = vst.msk [vmem:[%s7 + $0x48] sm:$0xff] %vm1077, %v986
  %1088 = vst.msk [vmem:[%s7 + $0x50] sm:$0xff] %vm1077, %v991
  %1089 = vst.msk [vmem:[%s7 + $0x58] sm:$0xff] %vm1077, %v994
  %1090 = vst.msk [vmem:[%s7 + $0x60] sm:$0xff] %vm1077, %v999
  %1091 = vst.msk [vmem:[%s7 + $0x68] sm:$0xff] %vm1077, %v1002
  %1092 = vst.msk [vmem:[%s7 + $0x70] sm:$0xff] %vm1077, %v1007
  %1093 = vst.msk [vmem:[%s7 + $0x78] sm:$0xff] %vm1077, %v1010
  %1094 = vst.msk [vmem:[%s7 + $0x80] sm:$0xff] %vm1077, %v1015
  %1095 = vst.msk [vmem:[%s7 + $0x88] sm:$0xff] %vm1077, %v1018
  %1096 = vst.msk [vmem:[%s7 + $0x90] sm:$0xff] %vm1077, %v1023
  %1097 = vst.msk [vmem:[%s7 + $0x98] sm:$0xff] %vm1077, %v1026
  %1098 = vst.msk [vmem:[%s7 + $0xa0] sm:$0xff] %vm1077, %v1031
  %1099 = vst.msk [vmem:[%s7 + $0xa8] sm:$0xff] %vm1077, %v1034
  %1100 = vst.msk [vmem:[%s7 + $0xb0] sm:$0xff] %vm1077, %v1039
  %1101 = vst.msk [vmem:[%s7 + $0xb8] sm:$0xff] %vm1077, %v1042
  %1102 = vst.msk [vmem:[%s7 + $0xc0] sm:$0xff] %vm1077, %v1047
  %1103 = vst.msk [vmem:[%s7 + $0xc8] sm:$0xff] %vm1077, %v1050
  %1104 = vst.msk [vmem:[%s7 + $0xd0] sm:$0xff] %vm1077, %v1055
  %1105 = vst.msk [vmem:[%s7 + $0xd8] sm:$0xff] %vm1077, %v1058
  %1106 = vst.msk [vmem:[%s7 + $0xe0] sm:$0xff] %vm1077, %v1063
  %1107 = vst.msk [vmem:[%s7 + $0xe8] sm:$0xff] %vm1077, %v1066
  %1108 = vst.msk [vmem:[%s7 + $0xf0] sm:$0xff] %vm1077, %v1071
  %1109 = vst.msk [vmem:[%s7 + $0xf8] sm:$0xff] %vm1077, %v1074
  // Predicated region
  $region30: #{tpu_custom_call.1} parent=0 // pred_check
    _
  $region31: #{tpu_custom_call.1} parent=0 // pred_check_branch
    %1111 = sbr.rel (0) target = $region33
  $region32: #{tpu_custom_call.1} parent=0 // pred_region
    _
  $region33: #{tpu_custom_call.1} parent=0 // pred_fallthru
    _
  // Predicated region
  $region34: #{tpu_custom_call.1} parent=0 // pred_check
    _
  $region35: #{tpu_custom_call.1} parent=0 // pred_check_branch
    %1113 = sbr.rel (0) target = $region37
  $region36: #{tpu_custom_call.1} parent=0 // pred_region
    _
  $region37: #{tpu_custom_call.1} parent=0 // pred_fallthru
    _

// kernel: tpu_custom_call.1
$region0: #{tpu_custom_call.1}
  #allocation0 [shape = 'u32[]', space=smem, size = 0x4, offset = 0x4, fixed_abs, tag = 'smem constant byte address 0x4 - core index']
  #allocation1 [shape = 'u32[144,128]{1,0:T(1,128)}', space=vmem, size = 0x12000, scoped, tag = 'internal scratch']
  %s0 = inlined_call_operand.vmem [shape: f32[256,32], index: 0, kind: input, shape index: {}]
  %s1 = inlined_call_operand.vmem [shape: bf16[32,128], index: 1, kind: input, shape index: {}]
  %s2 = inlined_call_operand.vmem [shape: f32[1,128], index: 2, kind: input, shape index: {}]
  %s3 = inlined_call_operand.vmem [shape: bf16[128,128], index: 3, kind: input, shape index: {}]
  %s4 = inlined_call_operand.vmem [shape: f32[1,128], index: 4, kind: input, shape index: {}]
  %s5 = inlined_call_operand.vmem [shape: bf16[128,8], index: 5, kind: input, shape index: {}]
  %s6 = inlined_call_operand.vmem [shape: f32[1,8], index: 6, kind: input, shape index: {}]
  %s7 = inlined_call_operand.vmem [shape: f32[256,8], index: 7, kind: output, shape index: {}]
  %s8 = sld [smem:[#allocation0]]
  $region38: #{tpu_custom_call.1} parent=0
    _
  %s10 = ssub.s32 1, %s8
  %s11 = scalar_select 0, %s10, %s8
  // Predicated region
  $region2: #{tpu_custom_call.1} parent=0 // pred_check
    _
  $region3: #{tpu_custom_call.1} parent=0 // pred_check_branch
    %13 = sbr.rel (0) target = $region5
  $region4: #{tpu_custom_call.1} parent=0 // pred_region
    _
  $region5: #{tpu_custom_call.1} parent=0 // pred_fallthru
    _
  // Predicated region
  $region6: #{tpu_custom_call.1} parent=0 // pred_check
    _
  $region7: #{tpu_custom_call.1} parent=0 // pred_check_branch
    %15 = sbr.rel (0) target = $region9
  $region8: #{tpu_custom_call.1} parent=0 // pred_region
    _
  $region9: #{tpu_custom_call.1} parent=0 // pred_fallthru
    _
  // Predicated region
  $region10: #{tpu_custom_call.1} parent=0 // pred_check
    _
  $region11: #{tpu_custom_call.1} parent=0 // pred_check_branch
    %17 = sbr.rel (0) target = $region13
  $region12: #{tpu_custom_call.1} parent=0 // pred_region
    _
  $region13: #{tpu_custom_call.1} parent=0 // pred_fallthru
    _
  // Predicated region
  $region14: #{tpu_custom_call.1} parent=0 // pred_check
    _
  $region15: #{tpu_custom_call.1} parent=0 // pred_check_branch
    %19 = sbr.rel (0) target = $region17
  $region16: #{tpu_custom_call.1} parent=0 // pred_region
    _
  $region17: #{tpu_custom_call.1} parent=0 // pred_fallthru
    _
  // Predicated region
  $region18: #{tpu_custom_call.1} parent=0 // pred_check
    _
  $region19: #{tpu_custom_call.1} parent=0 // pred_check_branch
    %21 = sbr.rel (0) target = $region21
  $region20: #{tpu_custom_call.1} parent=0 // pred_region
    _
  $region21: #{tpu_custom_call.1} parent=0 // pred_fallthru
    _
  // Predicated region
  $region22: #{tpu_custom_call.1} parent=0 // pred_check
    _
  $region23: #{tpu_custom_call.1} parent=0 // pred_check_branch
    %23 = sbr.rel (0) target = $region25
  $region24: #{tpu_custom_call.1} parent=0 // pred_region
    _
  $region25: #{tpu_custom_call.1} parent=0 // pred_fallthru
    _
  // Predicated region
  $region26: #{tpu_custom_call.1} parent=0 // pred_check
    _
  $region27: #{tpu_custom_call.1} parent=0 // pred_check_branch
    %25 = sbr.rel (0) target = $region29
  $region28: #{tpu_custom_call.1} parent=0 // pred_region
    _
  $region29: #{tpu_custom_call.1} parent=0 // pred_fallthru
    _
  %v27 = vld [vmem:[%s1] sm:$0xf]
  %v28 = vld [vmem:[%s1 + $0x4] sm:$0xf]
  %v29 = vld [vmem:[%s1 + $0x8] sm:$0xf]
  %v30 = vld [vmem:[%s1 + $0xc] sm:$0xf]
  %v31 = vld [vmem:[%s0] sm:$0xff]
  %v32 = vld [vmem:[%s0 + $0x8] sm:$0xff]
  %v33 = vld [vmem:[%s0 + $0x10] sm:$0xff]
  %v34 = vld [vmem:[%s0 + $0x18] sm:$0xff]
  %v35 = vld [vmem:[%s0 + $0x20] sm:$0xff]
  %v36 = vld [vmem:[%s0 + $0x28] sm:$0xff]
  %v37 = vld [vmem:[%s0 + $0x30] sm:$0xff]
  %v38 = vld [vmem:[%s0 + $0x38] sm:$0xff]
  %v39 = vld [vmem:[%s0 + $0x40] sm:$0xff]
  %v40 = vld [vmem:[%s0 + $0x48] sm:$0xff]
  %v41 = vld [vmem:[%s0 + $0x50] sm:$0xff]
  %v42 = vld [vmem:[%s0 + $0x58] sm:$0xff]
  %v43 = vld [vmem:[%s0 + $0x60] sm:$0xff]
  %v44 = vld [vmem:[%s0 + $0x68] sm:$0xff]
  %v45 = vld [vmem:[%s0 + $0x70] sm:$0xff]
  %v46 = vld [vmem:[%s0 + $0x78] sm:$0xff]
  %v47 = vld [vmem:[%s0 + $0x80] sm:$0xff]
  %v48 = vld [vmem:[%s0 + $0x88] sm:$0xff]
  %v49 = vld [vmem:[%s0 + $0x90] sm:$0xff]
  %v50 = vld [vmem:[%s0 + $0x98] sm:$0xff]
  %v51 = vld [vmem:[%s0 + $0xa0] sm:$0xff]
  %v52 = vld [vmem:[%s0 + $0xa8] sm:$0xff]
  %v53 = vld [vmem:[%s0 + $0xb0] sm:$0xff]
  %v54 = vld [vmem:[%s0 + $0xb8] sm:$0xff]
  %v55 = vld [vmem:[%s0 + $0xc0] sm:$0xff]
  %v56 = vld [vmem:[%s0 + $0xc8] sm:$0xff]
  %v57 = vld [vmem:[%s0 + $0xd0] sm:$0xff]
  %v58 = vld [vmem:[%s0 + $0xd8] sm:$0xff]
  %v59 = vld [vmem:[%s0 + $0xe0] sm:$0xff]
  %v60 = vld [vmem:[%s0 + $0xe8] sm:$0xff]
  %v61 = vld [vmem:[%s0 + $0xf0] sm:$0xff]
  %v62 = vld [vmem:[%s0 + $0xf8] sm:$0xff]
  %v63 = vpack.c.bf16 %v32, %v31
  %v64 = vpack.c.bf16 %v34, %v33
  %v65 = vpack.c.bf16 %v36, %v35
  %v66 = vpack.c.bf16 %v38, %v37
  %v67 = vpack.c.bf16 %v40, %v39
  %v68 = vpack.c.bf16 %v42, %v41
  %v69 = vpack.c.bf16 %v44, %v43
  %v70 = vpack.c.bf16 %v46, %v45
  %v71 = vpack.c.bf16 %v48, %v47
  %v72 = vpack.c.bf16 %v50, %v49
  %v73 = vpack.c.bf16 %v52, %v51
  %v74 = vpack.c.bf16 %v54, %v53
  %v75 = vpack.c.bf16 %v56, %v55
  %v76 = vpack.c.bf16 %v58, %v57
  %v77 = vpack.c.bf16 %v60, %v59
  %v78 = vpack.c.bf16 %v62, %v61
  %v79 = vld [vmem:[%s2] sm:$0x1]
  %v81 = vlaneseq
  %v82 = vshrl.u32 %v81, 7
  %v83 = vsub.s32 0, %v82
  %v84 = vrot.slane %v79, %v83
  %v90 = vunpack.c.l.b16 %v27
  %v91 = vunpack.c.l.b16 %v28
  %v92 = vunpack.c.l.b16 %v29
  %v93 = vunpack.c.l.b16 %v30
  %v94 = vpack.c.b16 %v91, %v90
  %v95 = vpack.c.b16 %v93, %v92
  %vm98 = vcmask 261120
  %v100 = vsel %vm98, %v63, 0
  %v103 = vsel %vm98, %v64, 0
  %v106 = vsel %vm98, %v65, 0
  %v109 = vsel %vm98, %v66, 0
  %v112 = vsel %vm98, %v67, 0
  %v115 = vsel %vm98, %v68, 0
  %v118 = vsel %vm98, %v69, 0
  %v121 = vsel %vm98, %v70, 0
  %v124 = vsel %vm98, %v71, 0
  %v127 = vsel %vm98, %v72, 0
  %v130 = vsel %vm98, %v73, 0
  %v133 = vsel %vm98, %v74, 0
  %v136 = vsel %vm98, %v75, 0
  %v139 = vsel %vm98, %v76, 0
  %v142 = vsel %vm98, %v77, 0
  %v145 = vsel %vm98, %v78, 0
  %147 = vmatprep.subr.bf16.mxu0 0
  %148 = vmatpush1.bf16.msra.mxu0 0
  %149 = vmatprep.subr.bf16.mxu0 0
  %150 = vmatpush1.bf16.msra.mxu0 0
  %151 = vmatprep.subr.bf16.mxu0 0
  %152 = vmatpush1.bf16.msra.mxu0 0
  %153 = vmatprep.subr.bf16.mxu0 0
  %154 = vmatpush1.bf16.msra.mxu0 0
  %155 = vmatprep.subr.bf16.mxu0 0
  %156 = vmatpush1.bf16.msra.mxu0 0
  %157 = vmatprep.subr.bf16.mxu0 0
  %158 = vmatpush1.bf16.msra.mxu0 0
  %159 = vmatprep.subr.bf16.mxu0 0
  %160 = vmatpush1.bf16.msra.mxu0 %v95
  %161 = vmatprep.subr.bf16.mxu0 0
  %162 = vmatpush1.bf16.msra.mxu0 %v94
  %163 = vmatprep.subr.bf16.mxu0 0
  %164 = vmatpush2.bf16.msra.mxu0 0
  %165 = vmatprep.subr.bf16.mxu0 0
  %166 = vmatpush2.bf16.msra.mxu0 0
  %167 = vmatprep.subr.bf16.mxu0 0
  %168 = vmatpush2.bf16.msra.mxu0 0
  %169 = vmatprep.subr.bf16.mxu0 0
  %170 = vmatpush2.bf16.msra.mxu0 0
  %171 = vmatprep.subr.bf16.mxu0 0
  %172 = vmatpush2.bf16.msra.mxu0 0
  %173 = vmatprep.subr.bf16.mxu0 0
  %174 = vmatpush2.bf16.msra.mxu0 0
  %175 = vmatprep.subr.bf16.mxu0 0
  %176 = vmatpush2.bf16.msra.mxu0 0
  %177 = vmatprep.subr.bf16.mxu0 0
  %178 = vmatpush2.bf16.msra.mxu0 0
  %179 = vmatprep.mubr.bf16.mxu0 0
  %180 = vmatmul.mubr.bf16.gmra.mxu0 %v100
  %v181 = vpop.f32.mrf.mxu0
  %v182 = vadd.f32 %v84, %v181
  %v183 = vpop.f32.mrf.mxu0
  %v184 = vpop.f32.mrf.mxu0
  %v185 = vadd.f32 %v84, %v184
  %v186 = vpop.f32.mrf.mxu0
  %187 = vmatprep.mubr.bf16.mxu0 0
  %188 = vmatmul.mubr.bf16.gmra.mxu0 %v103
  %v189 = vpop.f32.mrf.mxu0
  %v190 = vadd.f32 %v84, %v189
  %v191 = vpop.f32.mrf.mxu0
  %v192 = vpop.f32.mrf.mxu0
  %v193 = vadd.f32 %v84, %v192
  %v194 = vpop.f32.mrf.mxu0
  %195 = vmatprep.mubr.bf16.mxu0 0
  %196 = vmatmul.mubr.bf16.gmra.mxu0 %v106
  %v197 = vpop.f32.mrf.mxu0
  %v198 = vadd.f32 %v84, %v197
  %v199 = vpop.f32.mrf.mxu0
  %v200 = vpop.f32.mrf.mxu0
  %v201 = vadd.f32 %v84, %v200
  %v202 = vpop.f32.mrf.mxu0
  %203 = vmatprep.mubr.bf16.mxu0 0
  %204 = vmatmul.mubr.bf16.gmra.mxu0 %v109
  %v205 = vpop.f32.mrf.mxu0
  %v206 = vadd.f32 %v84, %v205
  %v207 = vpop.f32.mrf.mxu0
  %v208 = vpop.f32.mrf.mxu0
  %v209 = vadd.f32 %v84, %v208
  %v210 = vpop.f32.mrf.mxu0
  %211 = vmatprep.mubr.bf16.mxu0 0
  %212 = vmatmul.mubr.bf16.gmra.mxu0 %v112
  %v213 = vpop.f32.mrf.mxu0
  %v214 = vadd.f32 %v84, %v213
  %v215 = vpop.f32.mrf.mxu0
  %v216 = vpop.f32.mrf.mxu0
  %v217 = vadd.f32 %v84, %v216
  %v218 = vpop.f32.mrf.mxu0
  %219 = vmatprep.mubr.bf16.mxu0 0
  %220 = vmatmul.mubr.bf16.gmra.mxu0 %v115
  %v221 = vpop.f32.mrf.mxu0
  %v222 = vadd.f32 %v84, %v221
  %v223 = vpop.f32.mrf.mxu0
  %v224 = vpop.f32.mrf.mxu0
  %v225 = vadd.f32 %v84, %v224
  %v226 = vpop.f32.mrf.mxu0
  %227 = vmatprep.mubr.bf16.mxu0 0
  %228 = vmatmul.mubr.bf16.gmra.mxu0 %v118
  %v229 = vpop.f32.mrf.mxu0
  %v230 = vadd.f32 %v84, %v229
  %v231 = vpop.f32.mrf.mxu0
  %v232 = vpop.f32.mrf.mxu0
  %v233 = vadd.f32 %v84, %v232
  %v234 = vpop.f32.mrf.mxu0
  %235 = vmatprep.mubr.bf16.mxu0 0
  %236 = vmatmul.mubr.bf16.gmra.mxu0 %v121
  %v237 = vpop.f32.mrf.mxu0
  %v238 = vadd.f32 %v84, %v237
  %v239 = vpop.f32.mrf.mxu0
  %v240 = vpop.f32.mrf.mxu0
  %v241 = vadd.f32 %v84, %v240
  %v242 = vpop.f32.mrf.mxu0
  %243 = vmatprep.mubr.bf16.mxu0 0
  %244 = vmatmul.mubr.bf16.gmra.mxu0 %v124
  %v245 = vpop.f32.mrf.mxu0
  %v246 = vadd.f32 %v84, %v245
  %v247 = vpop.f32.mrf.mxu0
  %v248 = vpop.f32.mrf.mxu0
  %v249 = vadd.f32 %v84, %v248
  %v250 = vpop.f32.mrf.mxu0
  %251 = vmatprep.mubr.bf16.mxu0 0
  %252 = vmatmul.mubr.bf16.gmra.mxu0 %v127
  %v253 = vpop.f32.mrf.mxu0
  %v254 = vadd.f32 %v84, %v253
  %v255 = vpop.f32.mrf.mxu0
  %v256 = vpop.f32.mrf.mxu0
  %v257 = vadd.f32 %v84, %v256
  %v258 = vpop.f32.mrf.mxu0
  %259 = vmatprep.mubr.bf16.mxu0 0
  %260 = vmatmul.mubr.bf16.gmra.mxu0 %v130
  %v261 = vpop.f32.mrf.mxu0
  %v262 = vadd.f32 %v84, %v261
  %v263 = vpop.f32.mrf.mxu0
  %v264 = vpop.f32.mrf.mxu0
  %v265 = vadd.f32 %v84, %v264
  %v266 = vpop.f32.mrf.mxu0
  %267 = vmatprep.mubr.bf16.mxu0 0
  %268 = vmatmul.mubr.bf16.gmra.mxu0 %v133
  %v269 = vpop.f32.mrf.mxu0
  %v270 = vadd.f32 %v84, %v269
  %v271 = vpop.f32.mrf.mxu0
  %v272 = vpop.f32.mrf.mxu0
  %v273 = vadd.f32 %v84, %v272
  %v274 = vpop.f32.mrf.mxu0
  %275 = vmatprep.mubr.bf16.mxu0 0
  %276 = vmatmul.mubr.bf16.gmra.mxu0 %v136
  %v277 = vpop.f32.mrf.mxu0
  %v278 = vadd.f32 %v84, %v277
  %v279 = vpop.f32.mrf.mxu0
  %v280 = vpop.f32.mrf.mxu0
  %v281 = vadd.f32 %v84, %v280
  %v282 = vpop.f32.mrf.mxu0
  %283 = vmatprep.mubr.bf16.mxu0 0
  %284 = vmatmul.mubr.bf16.gmra.mxu0 %v139
  %v285 = vpop.f32.mrf.mxu0
  %v286 = vadd.f32 %v84, %v285
  %v287 = vpop.f32.mrf.mxu0
  %v288 = vpop.f32.mrf.mxu0
  %v289 = vadd.f32 %v84, %v288
  %v290 = vpop.f32.mrf.mxu0
  %291 = vmatprep.mubr.bf16.mxu0 0
  %292 = vmatmul.mubr.bf16.gmra.mxu0 %v142
  %v293 = vpop.f32.mrf.mxu0
  %v294 = vadd.f32 %v84, %v293
  %v295 = vpop.f32.mrf.mxu0
  %v296 = vpop.f32.mrf.mxu0
  %v297 = vadd.f32 %v84, %v296
  %v298 = vpop.f32.mrf.mxu0
  %299 = vmatprep.mubr.bf16.mxu0 0
  %300 = vmatmul.mubr.bf16.gmra.mxu0 %v145
  %v301 = vpop.f32.mrf.mxu0
  %v302 = vadd.f32 %v84, %v301
  %v303 = vpop.f32.mrf.mxu0
  %v304 = vpop.f32.mrf.mxu0
  %v305 = vadd.f32 %v84, %v304
  %v306 = vpop.f32.mrf.mxu0
  %307 = vdwg.mxu0
  %v308 = vmax.f32 %v182, 0.0
  %v309 = vmax.f32 %v185, 0.0
  %v310 = vmax.f32 %v190, 0.0
  %v311 = vmax.f32 %v193, 0.0
  %v312 = vmax.f32 %v198, 0.0
  %v313 = vmax.f32 %v201, 0.0
  %v314 = vmax.f32 %v206, 0.0
  %v315 = vmax.f32 %v209, 0.0
  %v316 = vmax.f32 %v214, 0.0
  %v317 = vmax.f32 %v217, 0.0
  %v318 = vmax.f32 %v222, 0.0
  %v319 = vmax.f32 %v225, 0.0
  %v320 = vmax.f32 %v230, 0.0
  %v321 = vmax.f32 %v233, 0.0
  %v322 = vmax.f32 %v238, 0.0
  %v323 = vmax.f32 %v241, 0.0
  %v324 = vmax.f32 %v246, 0.0
  %v325 = vmax.f32 %v249, 0.0
  %v326 = vmax.f32 %v254, 0.0
  %v327 = vmax.f32 %v257, 0.0
  %v328 = vmax.f32 %v262, 0.0
  %v329 = vmax.f32 %v265, 0.0
  %v330 = vmax.f32 %v270, 0.0
  %v331 = vmax.f32 %v273, 0.0
  %v332 = vmax.f32 %v278, 0.0
  %v333 = vmax.f32 %v281, 0.0
  %v334 = vmax.f32 %v286, 0.0
  %v335 = vmax.f32 %v289, 0.0
  %v336 = vmax.f32 %v294, 0.0
  %v337 = vmax.f32 %v297, 0.0
  %v338 = vmax.f32 %v302, 0.0
  %v339 = vmax.f32 %v305, 0.0
  %v340 = vld [vmem:[%s3] sm:$0xf]
  %v341 = vld [vmem:[%s3 + $0x4] sm:$0xf]
  %v342 = vld [vmem:[%s3 + $0x8] sm:$0xf]
  %v343 = vld [vmem:[%s3 + $0xc] sm:$0xf]
  %v344 = vld [vmem:[%s3 + $0x10] sm:$0xf]
  %v345 = vld [vmem:[%s3 + $0x14] sm:$0xf]
  %v346 = vld [vmem:[%s3 + $0x18] sm:$0xf]
  %v347 = vld [vmem:[%s3 + $0x1c] sm:$0xf]
  %v348 = vld [vmem:[%s3 + $0x20] sm:$0xf]
  %v349 = vld [vmem:[%s3 + $0x24] sm:$0xf]
  %v350 = vld [vmem:[%s3 + $0x28] sm:$0xf]
  %v351 = vld [vmem:[%s3 + $0x2c] sm:$0xf]
  %v352 = vld [vmem:[%s3 + $0x30] sm:$0xf]
  %v353 = vld [vmem:[%s3 + $0x34] sm:$0xf]
  %v354 = vld [vmem:[%s3 + $0x38] sm:$0xf]
  %v355 = vld [vmem:[%s3 + $0x3c] sm:$0xf]
  %v356 = vld [vmem:[%s4] sm:$0x1]
  %v357 = vpack.c.bf16 %v309, %v308
  %v358 = vpack.c.bf16 %v311, %v310
  %v359 = vpack.c.bf16 %v313, %v312
  %v360 = vpack.c.bf16 %v315, %v314
  %v361 = vpack.c.bf16 %v317, %v316
  %v362 = vpack.c.bf16 %v319, %v318
  %v363 = vpack.c.bf16 %v321, %v320
  %v364 = vpack.c.bf16 %v323, %v322
  %v365 = vpack.c.bf16 %v325, %v324
  %v366 = vpack.c.bf16 %v327, %v326
  %v367 = vpack.c.bf16 %v329, %v328
  %v368 = vpack.c.bf16 %v331, %v330
  %v369 = vpack.c.bf16 %v333, %v332
  %v370 = vpack.c.bf16 %v335, %v334
  %v371 = vpack.c.bf16 %v337, %v336
  %v372 = vpack.c.bf16 %v339, %v338
  %v374 = vlaneseq
  %v375 = vshrl.u32 %v374, 7
  %v376 = vsub.s32 0, %v375
  %v377 = vrot.slane %v356, %v376
  %v395 = vunpack.c.l.b16 %v340
  %v396 = vunpack.c.l.b16 %v341
  %v397 = vunpack.c.l.b16 %v342
  %v398 = vunpack.c.l.b16 %v343
  %v399 = vunpack.c.l.b16 %v344
  %v400 = vunpack.c.l.b16 %v345
  %v401 = vunpack.c.l.b16 %v346
  %v402 = vunpack.c.l.b16 %v347
  %v403 = vunpack.c.l.b16 %v348
  %v404 = vunpack.c.l.b16 %v349
  %v405 = vunpack.c.l.b16 %v350
  %v406 = vunpack.c.l.b16 %v351
  %v407 = vunpack.c.l.b16 %v352
  %v408 = vunpack.c.l.b16 %v353
  %v409 = vunpack.c.l.b16 %v354
  %v410 = vunpack.c.l.b16 %v355
  %v411 = vpack.c.b16 %v396, %v395
  %v412 = vpack.c.b16 %v398, %v397
  %v413 = vpack.c.b16 %v400, %v399
  %v414 = vpack.c.b16 %v402, %v401
  %v415 = vpack.c.b16 %v404, %v403
  %v416 = vpack.c.b16 %v406, %v405
  %v417 = vpack.c.b16 %v408, %v407
  %v418 = vpack.c.b16 %v410, %v409
  %427 = vmatprep.subr.bf16.mxu0 0
  %428 = vmatpush1.bf16.msra.mxu0 %v418
  %429 = vmatprep.subr.bf16.mxu0 0
  %430 = vmatpush1.bf16.msra.mxu0 %v417
  %431 = vmatprep.subr.bf16.mxu0 0
  %432 = vmatpush1.bf16.msra.mxu0 %v416
  %433 = vmatprep.subr.bf16.mxu0 0
  %434 = vmatpush1.bf16.msra.mxu0 %v415
  %435 = vmatprep.subr.bf16.mxu0 0
  %436 = vmatpush1.bf16.msra.mxu0 %v414
  %437 = vmatprep.subr.bf16.mxu0 0
  %438 = vmatpush1.bf16.msra.mxu0 %v413
  %439 = vmatprep.subr.bf16.mxu0 0
  %440 = vmatpush1.bf16.msra.mxu0 %v412
  %441 = vmatprep.subr.bf16.mxu0 0
  %442 = vmatpush1.bf16.msra.mxu0 %v411
  %443 = vmatprep.subr.bf16.mxu0 0
  %444 = vmatpush2.bf16.msra.mxu0 0
  %445 = vmatprep.subr.bf16.mxu0 0
  %446 = vmatpush2.bf16.msra.mxu0 0
  %447 = vmatprep.subr.bf16.mxu0 0
  %448 = vmatpush2.bf16.msra.mxu0 0
  %449 = vmatprep.subr.bf16.mxu0 0
  %450 = vmatpush2.bf16.msra.mxu0 0
  %451 = vmatprep.subr.bf16.mxu0 0
  %452 = vmatpush2.bf16.msra.mxu0 0
  %453 = vmatprep.subr.bf16.mxu0 0
  %454 = vmatpush2.bf16.msra.mxu0 0
  %455 = vmatprep.subr.bf16.mxu0 0
  %456 = vmatpush2.bf16.msra.mxu0 0
  %457 = vmatprep.subr.bf16.mxu0 0
  %458 = vmatpush2.bf16.msra.mxu0 0
  %459 = vmatprep.mubr.bf16.mxu0 0
  %460 = vmatmul.mubr.bf16.gmra.mxu0 %v357
  %v461 = vpop.f32.mrf.mxu0
  %v462 = vadd.f32 %v377, %v461
  %v463 = vpop.f32.mrf.mxu0
  %v464 = vpop.f32.mrf.mxu0
  %v465 = vadd.f32 %v377, %v464
  %v466 = vpop.f32.mrf.mxu0
  %467 = vmatprep.mubr.bf16.mxu0 0
  %468 = vmatmul.mubr.bf16.gmra.mxu0 %v358
  %v469 = vpop.f32.mrf.mxu0
  %v470 = vadd.f32 %v377, %v469
  %v471 = vpop.f32.mrf.mxu0
  %v472 = vpop.f32.mrf.mxu0
  %v473 = vadd.f32 %v377, %v472
  %v474 = vpop.f32.mrf.mxu0
  %475 = vmatprep.mubr.bf16.mxu0 0
  %476 = vmatmul.mubr.bf16.gmra.mxu0 %v359
  %v477 = vpop.f32.mrf.mxu0
  %v478 = vadd.f32 %v377, %v477
  %v479 = vpop.f32.mrf.mxu0
  %v480 = vpop.f32.mrf.mxu0
  %v481 = vadd.f32 %v377, %v480
  %v482 = vpop.f32.mrf.mxu0
  %483 = vmatprep.mubr.bf16.mxu0 0
  %484 = vmatmul.mubr.bf16.gmra.mxu0 %v360
  %v485 = vpop.f32.mrf.mxu0
  %v486 = vadd.f32 %v377, %v485
  %v487 = vpop.f32.mrf.mxu0
  %v488 = vpop.f32.mrf.mxu0
  %v489 = vadd.f32 %v377, %v488
  %v490 = vpop.f32.mrf.mxu0
  %491 = vmatprep.mubr.bf16.mxu0 0
  %492 = vmatmul.mubr.bf16.gmra.mxu0 %v361
  %v493 = vpop.f32.mrf.mxu0
  %v494 = vadd.f32 %v377, %v493
  %v495 = vpop.f32.mrf.mxu0
  %v496 = vpop.f32.mrf.mxu0
  %v497 = vadd.f32 %v377, %v496
  %v498 = vpop.f32.mrf.mxu0
  %499 = vmatprep.mubr.bf16.mxu0 0
  %500 = vmatmul.mubr.bf16.gmra.mxu0 %v362
  %v501 = vpop.f32.mrf.mxu0
  %v502 = vadd.f32 %v377, %v501
  %v503 = vpop.f32.mrf.mxu0
  %v504 = vpop.f32.mrf.mxu0
  %v505 = vadd.f32 %v377, %v504
  %v506 = vpop.f32.mrf.mxu0
  %507 = vmatprep.mubr.bf16.mxu0 0
  %508 = vmatmul.mubr.bf16.gmra.mxu0 %v363
  %v509 = vpop.f32.mrf.mxu0
  %v510 = vadd.f32 %v377, %v509
  %v511 = vpop.f32.mrf.mxu0
  %v512 = vpop.f32.mrf.mxu0
  %v513 = vadd.f32 %v377, %v512
  %v514 = vpop.f32.mrf.mxu0
  %515 = vmatprep.mubr.bf16.mxu0 0
  %516 = vmatmul.mubr.bf16.gmra.mxu0 %v364
  %v517 = vpop.f32.mrf.mxu0
  %v518 = vadd.f32 %v377, %v517
  %v519 = vpop.f32.mrf.mxu0
  %v520 = vpop.f32.mrf.mxu0
  %v521 = vadd.f32 %v377, %v520
  %v522 = vpop.f32.mrf.mxu0
  %523 = vmatprep.mubr.bf16.mxu0 0
  %524 = vmatmul.mubr.bf16.gmra.mxu0 %v365
  %v525 = vpop.f32.mrf.mxu0
  %v526 = vadd.f32 %v377, %v525
  %v527 = vpop.f32.mrf.mxu0
  %v528 = vpop.f32.mrf.mxu0
  %v529 = vadd.f32 %v377, %v528
  %v530 = vpop.f32.mrf.mxu0
  %531 = vmatprep.mubr.bf16.mxu0 0
  %532 = vmatmul.mubr.bf16.gmra.mxu0 %v366
  %v533 = vpop.f32.mrf.mxu0
  %v534 = vadd.f32 %v377, %v533
  %v535 = vpop.f32.mrf.mxu0
  %v536 = vpop.f32.mrf.mxu0
  %v537 = vadd.f32 %v377, %v536
  %v538 = vpop.f32.mrf.mxu0
  %539 = vmatprep.mubr.bf16.mxu0 0
  %540 = vmatmul.mubr.bf16.gmra.mxu0 %v367
  %v541 = vpop.f32.mrf.mxu0
  %v542 = vadd.f32 %v377, %v541
  %v543 = vpop.f32.mrf.mxu0
  %v544 = vpop.f32.mrf.mxu0
  %v545 = vadd.f32 %v377, %v544
  %v546 = vpop.f32.mrf.mxu0
  %547 = vmatprep.mubr.bf16.mxu0 0
  %548 = vmatmul.mubr.bf16.gmra.mxu0 %v368
  %v549 = vpop.f32.mrf.mxu0
  %v550 = vadd.f32 %v377, %v549
  %v551 = vpop.f32.mrf.mxu0
  %v552 = vpop.f32.mrf.mxu0
  %v553 = vadd.f32 %v377, %v552
  %v554 = vpop.f32.mrf.mxu0
  %555 = vmatprep.mubr.bf16.mxu0 0
  %556 = vmatmul.mubr.bf16.gmra.mxu0 %v369
  %v557 = vpop.f32.mrf.mxu0
  %v558 = vadd.f32 %v377, %v557
  %v559 = vpop.f32.mrf.mxu0
  %v560 = vpop.f32.mrf.mxu0
  %v561 = vadd.f32 %v377, %v560
  %v562 = vpop.f32.mrf.mxu0
  %563 = vmatprep.mubr.bf16.mxu0 0
  %564 = vmatmul.mubr.bf16.gmra.mxu0 %v370
  %v565 = vpop.f32.mrf.mxu0
  %v566 = vadd.f32 %v377, %v565
  %v567 = vpop.f32.mrf.mxu0
  %v568 = vpop.f32.mrf.mxu0
  %v569 = vadd.f32 %v377, %v568
  %v570 = vpop.f32.mrf.mxu0
  %571 = vmatprep.mubr.bf16.mxu0 0
  %572 = vmatmul.mubr.bf16.gmra.mxu0 %v371
  %v573 = vpop.f32.mrf.mxu0
  %v574 = vadd.f32 %v377, %v573
  %v575 = vpop.f32.mrf.mxu0
  %v576 = vpop.f32.mrf.mxu0
  %v577 = vadd.f32 %v377, %v576
  %v578 = vpop.f32.mrf.mxu0
  %579 = vmatprep.mubr.bf16.mxu0 0
  %580 = vmatmul.mubr.bf16.gmra.mxu0 %v372
  %v581 = vpop.f32.mrf.mxu0
  %v582 = vadd.f32 %v377, %v581
  %v583 = vpop.f32.mrf.mxu0
  %v584 = vpop.f32.mrf.mxu0
  %v585 = vadd.f32 %v377, %v584
  %v586 = vpop.f32.mrf.mxu0
  %587 = vdwg.mxu0
  %v588 = vmax.f32 %v462, 0.0
  %v589 = vmax.f32 %v465, 0.0
  %v590 = vmax.f32 %v470, 0.0
  %v591 = vmax.f32 %v473, 0.0
  %v592 = vmax.f32 %v478, 0.0
  %v593 = vmax.f32 %v481, 0.0
  %v594 = vmax.f32 %v486, 0.0
  %v595 = vmax.f32 %v489, 0.0
  %v596 = vmax.f32 %v494, 0.0
  %v597 = vmax.f32 %v497, 0.0
  %v598 = vmax.f32 %v502, 0.0
  %v599 = vmax.f32 %v505, 0.0
  %v600 = vmax.f32 %v510, 0.0
  %v601 = vmax.f32 %v513, 0.0
  %v602 = vmax.f32 %v518, 0.0
  %v603 = vmax.f32 %v521, 0.0
  %v604 = vmax.f32 %v526, 0.0
  %v605 = vmax.f32 %v529, 0.0
  %v606 = vmax.f32 %v534, 0.0
  %v607 = vmax.f32 %v537, 0.0
  %v608 = vmax.f32 %v542, 0.0
  %v609 = vmax.f32 %v545, 0.0
  %v610 = vmax.f32 %v550, 0.0
  %v611 = vmax.f32 %v553, 0.0
  %v612 = vmax.f32 %v558, 0.0
  %v613 = vmax.f32 %v561, 0.0
  %v614 = vmax.f32 %v566, 0.0
  %v615 = vmax.f32 %v569, 0.0
  %v616 = vmax.f32 %v574, 0.0
  %v617 = vmax.f32 %v577, 0.0
  %v618 = vmax.f32 %v582, 0.0
  %v619 = vmax.f32 %v585, 0.0
  %v620 = vpack.c.bf16 %v589, %v588
  %v621 = vpack.c.bf16 %v591, %v590
  %v622 = vpack.c.bf16 %v593, %v592
  %v623 = vpack.c.bf16 %v595, %v594
  %v624 = vpack.c.bf16 %v597, %v596
  %v625 = vpack.c.bf16 %v599, %v598
  %v626 = vpack.c.bf16 %v601, %v600
  %v627 = vpack.c.bf16 %v603, %v602
  %v628 = vpack.c.bf16 %v605, %v604
  %v629 = vpack.c.bf16 %v607, %v606
  %v630 = vpack.c.bf16 %v609, %v608
  %v631 = vpack.c.bf16 %v611, %v610
  %v632 = vpack.c.bf16 %v613, %v612
  %v633 = vpack.c.bf16 %v615, %v614
  %v634 = vpack.c.bf16 %v617, %v616
  %v635 = vpack.c.bf16 %v619, %v618
  %636 = vmatprep.subr.bf16.mxu0 0
  %637 = vmatpush1.bf16.msra.mxu0 %v418
  %638 = vmatprep.subr.bf16.mxu0 0
  %639 = vmatpush1.bf16.msra.mxu0 %v417
  %640 = vmatprep.subr.bf16.mxu0 0
  %641 = vmatpush1.bf16.msra.mxu0 %v416
  %642 = vmatprep.subr.bf16.mxu0 0
  %643 = vmatpush1.bf16.msra.mxu0 %v415
  %644 = vmatprep.subr.bf16.mxu0 0
  %645 = vmatpush1.bf16.msra.mxu0 %v414
  %646 = vmatprep.subr.bf16.mxu0 0
  %647 = vmatpush1.bf16.msra.mxu0 %v413
  %648 = vmatprep.subr.bf16.mxu0 0
  %649 = vmatpush1.bf16.msra.mxu0 %v412
  %650 = vmatprep.subr.bf16.mxu0 0
  %651 = vmatpush1.bf16.msra.mxu0 %v411
  %652 = vmatprep.subr.bf16.mxu0 0
  %653 = vmatpush2.bf16.msra.mxu0 0
  %654 = vmatprep.subr.bf16.mxu0 0
  %655 = vmatpush2.bf16.msra.mxu0 0
  %656 = vmatprep.subr.bf16.mxu0 0
  %657 = vmatpush2.bf16.msra.mxu0 0
  %658 = vmatprep.subr.bf16.mxu0 0
  %659 = vmatpush2.bf16.msra.mxu0 0
  %660 = vmatprep.subr.bf16.mxu0 0
  %661 = vmatpush2.bf16.msra.mxu0 0
  %662 = vmatprep.subr.bf16.mxu0 0
  %663 = vmatpush2.bf16.msra.mxu0 0
  %664 = vmatprep.subr.bf16.mxu0 0
  %665 = vmatpush2.bf16.msra.mxu0 0
  %666 = vmatprep.subr.bf16.mxu0 0
  %667 = vmatpush2.bf16.msra.mxu0 0
  %668 = vmatprep.mubr.bf16.mxu0 0
  %669 = vmatmul.mubr.bf16.gmra.mxu0 %v620
  %v670 = vpop.f32.mrf.mxu0
  %v671 = vadd.f32 %v377, %v670
  %v672 = vpop.f32.mrf.mxu0
  %v673 = vpop.f32.mrf.mxu0
  %v674 = vadd.f32 %v377, %v673
  %v675 = vpop.f32.mrf.mxu0
  %676 = vmatprep.mubr.bf16.mxu0 0
  %677 = vmatmul.mubr.bf16.gmra.mxu0 %v621
  %v678 = vpop.f32.mrf.mxu0
  %v679 = vadd.f32 %v377, %v678
  %v680 = vpop.f32.mrf.mxu0
  %v681 = vpop.f32.mrf.mxu0
  %v682 = vadd.f32 %v377, %v681
  %v683 = vpop.f32.mrf.mxu0
  %684 = vmatprep.mubr.bf16.mxu0 0
  %685 = vmatmul.mubr.bf16.gmra.mxu0 %v622
  %v686 = vpop.f32.mrf.mxu0
  %v687 = vadd.f32 %v377, %v686
  %v688 = vpop.f32.mrf.mxu0
  %v689 = vpop.f32.mrf.mxu0
  %v690 = vadd.f32 %v377, %v689
  %v691 = vpop.f32.mrf.mxu0
  %692 = vmatprep.mubr.bf16.mxu0 0
  %693 = vmatmul.mubr.bf16.gmra.mxu0 %v623
  %v694 = vpop.f32.mrf.mxu0
  %v695 = vadd.f32 %v377, %v694
  %v696 = vpop.f32.mrf.mxu0
  %v697 = vpop.f32.mrf.mxu0
  %v698 = vadd.f32 %v377, %v697
  %v699 = vpop.f32.mrf.mxu0
  %700 = vmatprep.mubr.bf16.mxu0 0
  %701 = vmatmul.mubr.bf16.gmra.mxu0 %v624
  %v702 = vpop.f32.mrf.mxu0
  %v703 = vadd.f32 %v377, %v702
  %v704 = vpop.f32.mrf.mxu0
  %v705 = vpop.f32.mrf.mxu0
  %v706 = vadd.f32 %v377, %v705
  %v707 = vpop.f32.mrf.mxu0
  %708 = vmatprep.mubr.bf16.mxu0 0
  %709 = vmatmul.mubr.bf16.gmra.mxu0 %v625
  %v710 = vpop.f32.mrf.mxu0
  %v711 = vadd.f32 %v377, %v710
  %v712 = vpop.f32.mrf.mxu0
  %v713 = vpop.f32.mrf.mxu0
  %v714 = vadd.f32 %v377, %v713
  %v715 = vpop.f32.mrf.mxu0
  %716 = vmatprep.mubr.bf16.mxu0 0
  %717 = vmatmul.mubr.bf16.gmra.mxu0 %v626
  %v718 = vpop.f32.mrf.mxu0
  %v719 = vadd.f32 %v377, %v718
  %v720 = vpop.f32.mrf.mxu0
  %v721 = vpop.f32.mrf.mxu0
  %v722 = vadd.f32 %v377, %v721
  %v723 = vpop.f32.mrf.mxu0
  %724 = vmatprep.mubr.bf16.mxu0 0
  %725 = vmatmul.mubr.bf16.gmra.mxu0 %v627
  %v726 = vpop.f32.mrf.mxu0
  %v727 = vadd.f32 %v377, %v726
  %v728 = vpop.f32.mrf.mxu0
  %v729 = vpop.f32.mrf.mxu0
  %v730 = vadd.f32 %v377, %v729
  %v731 = vpop.f32.mrf.mxu0
  %732 = vmatprep.mubr.bf16.mxu0 0
  %733 = vmatmul.mubr.bf16.gmra.mxu0 %v628
  %v734 = vpop.f32.mrf.mxu0
  %v735 = vadd.f32 %v377, %v734
  %v736 = vpop.f32.mrf.mxu0
  %v737 = vpop.f32.mrf.mxu0
  %v738 = vadd.f32 %v377, %v737
  %v739 = vpop.f32.mrf.mxu0
  %740 = vmatprep.mubr.bf16.mxu0 0
  %741 = vmatmul.mubr.bf16.gmra.mxu0 %v629
  %v742 = vpop.f32.mrf.mxu0
  %v743 = vadd.f32 %v377, %v742
  %v744 = vpop.f32.mrf.mxu0
  %v745 = vpop.f32.mrf.mxu0
  %v746 = vadd.f32 %v377, %v745
  %v747 = vpop.f32.mrf.mxu0
  %748 = vmatprep.mubr.bf16.mxu0 0
  %749 = vmatmul.mubr.bf16.gmra.mxu0 %v630
  %v750 = vpop.f32.mrf.mxu0
  %v751 = vadd.f32 %v377, %v750
  %v752 = vpop.f32.mrf.mxu0
  %v753 = vpop.f32.mrf.mxu0
  %v754 = vadd.f32 %v377, %v753
  %v755 = vpop.f32.mrf.mxu0
  %756 = vmatprep.mubr.bf16.mxu0 0
  %757 = vmatmul.mubr.bf16.gmra.mxu0 %v631
  %v758 = vpop.f32.mrf.mxu0
  %v759 = vadd.f32 %v377, %v758
  %v760 = vpop.f32.mrf.mxu0
  %v761 = vpop.f32.mrf.mxu0
  %v762 = vadd.f32 %v377, %v761
  %v763 = vpop.f32.mrf.mxu0
  %764 = vmatprep.mubr.bf16.mxu0 0
  %765 = vmatmul.mubr.bf16.gmra.mxu0 %v632
  %v766 = vpop.f32.mrf.mxu0
  %v767 = vadd.f32 %v377, %v766
  %v768 = vpop.f32.mrf.mxu0
  %v769 = vpop.f32.mrf.mxu0
  %v770 = vadd.f32 %v377, %v769
  %v771 = vpop.f32.mrf.mxu0
  %772 = vmatprep.mubr.bf16.mxu0 0
  %773 = vmatmul.mubr.bf16.gmra.mxu0 %v633
  %v774 = vpop.f32.mrf.mxu0
  %v775 = vadd.f32 %v377, %v774
  %v776 = vpop.f32.mrf.mxu0
  %v777 = vpop.f32.mrf.mxu0
  %v778 = vadd.f32 %v377, %v777
  %v779 = vpop.f32.mrf.mxu0
  %780 = vmatprep.mubr.bf16.mxu0 0
  %781 = vmatmul.mubr.bf16.gmra.mxu0 %v634
  %v782 = vpop.f32.mrf.mxu0
  %v783 = vadd.f32 %v377, %v782
  %v784 = vpop.f32.mrf.mxu0
  %v785 = vpop.f32.mrf.mxu0
  %v786 = vadd.f32 %v377, %v785
  %v787 = vpop.f32.mrf.mxu0
  %788 = vmatprep.mubr.bf16.mxu0 0
  %789 = vmatmul.mubr.bf16.gmra.mxu0 %v635
  %v790 = vpop.f32.mrf.mxu0
  %v791 = vadd.f32 %v377, %v790
  %v792 = vpop.f32.mrf.mxu0
  %v793 = vpop.f32.mrf.mxu0
  %v794 = vadd.f32 %v377, %v793
  %v795 = vpop.f32.mrf.mxu0
  %796 = vdwg.mxu0
  %v797 = vmax.f32 %v671, 0.0
  %v798 = vmax.f32 %v674, 0.0
  %v799 = vmax.f32 %v679, 0.0
  %v800 = vmax.f32 %v682, 0.0
  %v801 = vmax.f32 %v687, 0.0
  %v802 = vmax.f32 %v690, 0.0
  %v803 = vmax.f32 %v695, 0.0
  %v804 = vmax.f32 %v698, 0.0
  %v805 = vmax.f32 %v703, 0.0
  %v806 = vmax.f32 %v706, 0.0
  %v807 = vmax.f32 %v711, 0.0
  %v808 = vmax.f32 %v714, 0.0
  %v809 = vmax.f32 %v719, 0.0
  %v810 = vmax.f32 %v722, 0.0
  %v811 = vmax.f32 %v727, 0.0
  %v812 = vmax.f32 %v730, 0.0
  %v813 = vmax.f32 %v735, 0.0
  %v814 = vmax.f32 %v738, 0.0
  %v815 = vmax.f32 %v743, 0.0
  %v816 = vmax.f32 %v746, 0.0
  %v817 = vmax.f32 %v751, 0.0
  %v818 = vmax.f32 %v754, 0.0
  %v819 = vmax.f32 %v759, 0.0
  %v820 = vmax.f32 %v762, 0.0
  %v821 = vmax.f32 %v767, 0.0
  %v822 = vmax.f32 %v770, 0.0
  %v823 = vmax.f32 %v775, 0.0
  %v824 = vmax.f32 %v778, 0.0
  %v825 = vmax.f32 %v783, 0.0
  %v826 = vmax.f32 %v786, 0.0
  %v827 = vmax.f32 %v791, 0.0
  %v828 = vmax.f32 %v794, 0.0
  %v829 = vpack.c.bf16 %v798, %v797
  %v830 = vpack.c.bf16 %v800, %v799
  %v831 = vpack.c.bf16 %v802, %v801
  %v832 = vpack.c.bf16 %v804, %v803
  %v833 = vpack.c.bf16 %v806, %v805
  %v834 = vpack.c.bf16 %v808, %v807
  %v835 = vpack.c.bf16 %v810, %v809
  %v836 = vpack.c.bf16 %v812, %v811
  %v837 = vpack.c.bf16 %v814, %v813
  %v838 = vpack.c.bf16 %v816, %v815
  %v839 = vpack.c.bf16 %v818, %v817
  %v840 = vpack.c.bf16 %v820, %v819
  %v841 = vpack.c.bf16 %v822, %v821
  %v842 = vpack.c.bf16 %v824, %v823
  %v843 = vpack.c.bf16 %v826, %v825
  %v844 = vpack.c.bf16 %v828, %v827
  %v845 = vld [vmem:[%s5] sm:$0xf]
  %v846 = vld [vmem:[%s5 + $0x4] sm:$0xf]
  %v847 = vld [vmem:[%s5 + $0x8] sm:$0xf]
  %v848 = vld [vmem:[%s5 + $0xc] sm:$0xf]
  %v849 = vld [vmem:[%s5 + $0x10] sm:$0xf]
  %v850 = vld [vmem:[%s5 + $0x14] sm:$0xf]
  %v851 = vld [vmem:[%s5 + $0x18] sm:$0xf]
  %v852 = vld [vmem:[%s5 + $0x1c] sm:$0xf]
  %v853 = vld [vmem:[%s5 + $0x20] sm:$0xf]
  %v854 = vld [vmem:[%s5 + $0x24] sm:$0xf]
  %v855 = vld [vmem:[%s5 + $0x28] sm:$0xf]
  %v856 = vld [vmem:[%s5 + $0x2c] sm:$0xf]
  %v857 = vld [vmem:[%s5 + $0x30] sm:$0xf]
  %v858 = vld [vmem:[%s5 + $0x34] sm:$0xf]
  %v859 = vld [vmem:[%s5 + $0x38] sm:$0xf]
  %v860 = vld [vmem:[%s5 + $0x3c] sm:$0xf]
  %v861 = vld [vmem:[%s6] sm:$0x1]
  %v863 = vlaneseq
  %v864 = vshrl.u32 %v863, 7
  %v865 = vsub.s32 0, %v864
  %v866 = vrot.slane %v861, %v865
  %v884 = vunpack.c.l.b16 %v845
  %v885 = vunpack.c.l.b16 %v846
  %v886 = vunpack.c.l.b16 %v847
  %v887 = vunpack.c.l.b16 %v848
  %v888 = vunpack.c.l.b16 %v849
  %v889 = vunpack.c.l.b16 %v850
  %v890 = vunpack.c.l.b16 %v851
  %v891 = vunpack.c.l.b16 %v852
  %v892 = vunpack.c.l.b16 %v853
  %v893 = vunpack.c.l.b16 %v854
  %v894 = vunpack.c.l.b16 %v855
  %v895 = vunpack.c.l.b16 %v856
  %v896 = vunpack.c.l.b16 %v857
  %v897 = vunpack.c.l.b16 %v858
  %v898 = vunpack.c.l.b16 %v859
  %v899 = vunpack.c.l.b16 %v860
  %v900 = vpack.c.b16 %v885, %v884
  %v901 = vpack.c.b16 %v887, %v886
  %v902 = vpack.c.b16 %v889, %v888
  %v903 = vpack.c.b16 %v891, %v890
  %v904 = vpack.c.b16 %v893, %v892
  %v905 = vpack.c.b16 %v895, %v894
  %v906 = vpack.c.b16 %v897, %v896
  %v907 = vpack.c.b16 %v899, %v898
  %916 = vmatprep.subr.bf16.mxu0 0
  %917 = vmatpush1.bf16.msra.mxu0 %v907
  %918 = vmatprep.subr.bf16.mxu0 0
  %919 = vmatpush1.bf16.msra.mxu0 %v906
  %920 = vmatprep.subr.bf16.mxu0 0
  %921 = vmatpush1.bf16.msra.mxu0 %v905
  %922 = vmatprep.subr.bf16.mxu0 0
  %923 = vmatpush1.bf16.msra.mxu0 %v904
  %924 = vmatprep.subr.bf16.mxu0 0
  %925 = vmatpush1.bf16.msra.mxu0 %v903
  %926 = vmatprep.subr.bf16.mxu0 0
  %927 = vmatpush1.bf16.msra.mxu0 %v902
  %928 = vmatprep.subr.bf16.mxu0 0
  %929 = vmatpush1.bf16.msra.mxu0 %v901
  %930 = vmatprep.subr.bf16.mxu0 0
  %931 = vmatpush1.bf16.msra.mxu0 %v900
  %932 = vmatprep.subr.bf16.mxu0 0
  %933 = vmatpush2.bf16.msra.mxu0 0
  %934 = vmatprep.subr.bf16.mxu0 0
  %935 = vmatpush2.bf16.msra.mxu0 0
  %936 = vmatprep.subr.bf16.mxu0 0
  %937 = vmatpush2.bf16.msra.mxu0 0
  %938 = vmatprep.subr.bf16.mxu0 0
  %939 = vmatpush2.bf16.msra.mxu0 0
  %940 = vmatprep.subr.bf16.mxu0 0
  %941 = vmatpush2.bf16.msra.mxu0 0
  %942 = vmatprep.subr.bf16.mxu0 0
  %943 = vmatpush2.bf16.msra.mxu0 0
  %944 = vmatprep.subr.bf16.mxu0 0
  %945 = vmatpush2.bf16.msra.mxu0 0
  %946 = vmatprep.subr.bf16.mxu0 0
  %947 = vmatpush2.bf16.msra.mxu0 0
  %948 = vmatprep.mubr.bf16.mxu0 0
  %949 = vmatmul.mubr.bf16.gmra.mxu0 %v829
  %v950 = vpop.f32.mrf.mxu0
  %v951 = vadd.f32 %v866, %v950
  %v952 = vpop.f32.mrf.mxu0
  %v953 = vpop.f32.mrf.mxu0
  %v954 = vadd.f32 %v866, %v953
  %v955 = vpop.f32.mrf.mxu0
  %956 = vmatprep.mubr.bf16.mxu0 0
  %957 = vmatmul.mubr.bf16.gmra.mxu0 %v830
  %v958 = vpop.f32.mrf.mxu0
  %v959 = vadd.f32 %v866, %v958
  %v960 = vpop.f32.mrf.mxu0
  %v961 = vpop.f32.mrf.mxu0
  %v962 = vadd.f32 %v866, %v961
  %v963 = vpop.f32.mrf.mxu0
  %964 = vmatprep.mubr.bf16.mxu0 0
  %965 = vmatmul.mubr.bf16.gmra.mxu0 %v831
  %v966 = vpop.f32.mrf.mxu0
  %v967 = vadd.f32 %v866, %v966
  %v968 = vpop.f32.mrf.mxu0
  %v969 = vpop.f32.mrf.mxu0
  %v970 = vadd.f32 %v866, %v969
  %v971 = vpop.f32.mrf.mxu0
  %972 = vmatprep.mubr.bf16.mxu0 0
  %973 = vmatmul.mubr.bf16.gmra.mxu0 %v832
  %v974 = vpop.f32.mrf.mxu0
  %v975 = vadd.f32 %v866, %v974
  %v976 = vpop.f32.mrf.mxu0
  %v977 = vpop.f32.mrf.mxu0
  %v978 = vadd.f32 %v866, %v977
  %v979 = vpop.f32.mrf.mxu0
  %980 = vmatprep.mubr.bf16.mxu0 0
  %981 = vmatmul.mubr.bf16.gmra.mxu0 %v833
  %v982 = vpop.f32.mrf.mxu0
  %v983 = vadd.f32 %v866, %v982
  %v984 = vpop.f32.mrf.mxu0
  %v985 = vpop.f32.mrf.mxu0
  %v986 = vadd.f32 %v866, %v985
  %v987 = vpop.f32.mrf.mxu0
  %988 = vmatprep.mubr.bf16.mxu0 0
  %989 = vmatmul.mubr.bf16.gmra.mxu0 %v834
  %v990 = vpop.f32.mrf.mxu0
  %v991 = vadd.f32 %v866, %v990
  %v992 = vpop.f32.mrf.mxu0
  %v993 = vpop.f32.mrf.mxu0
  %v994 = vadd.f32 %v866, %v993
  %v995 = vpop.f32.mrf.mxu0
  %996 = vmatprep.mubr.bf16.mxu0 0
  %997 = vmatmul.mubr.bf16.gmra.mxu0 %v835
  %v998 = vpop.f32.mrf.mxu0
  %v999 = vadd.f32 %v866, %v998
  %v1000 = vpop.f32.mrf.mxu0
  %v1001 = vpop.f32.mrf.mxu0
  %v1002 = vadd.f32 %v866, %v1001
  %v1003 = vpop.f32.mrf.mxu0
  %1004 = vmatprep.mubr.bf16.mxu0 0
  %1005 = vmatmul.mubr.bf16.gmra.mxu0 %v836
  %v1006 = vpop.f32.mrf.mxu0
  %v1007 = vadd.f32 %v866, %v1006
  %v1008 = vpop.f32.mrf.mxu0
  %v1009 = vpop.f32.mrf.mxu0
  %v1010 = vadd.f32 %v866, %v1009
  %v1011 = vpop.f32.mrf.mxu0
  %1012 = vmatprep.mubr.bf16.mxu0 0
  %1013 = vmatmul.mubr.bf16.gmra.mxu0 %v837
  %v1014 = vpop.f32.mrf.mxu0
  %v1015 = vadd.f32 %v866, %v1014
  %v1016 = vpop.f32.mrf.mxu0
  %v1017 = vpop.f32.mrf.mxu0
  %v1018 = vadd.f32 %v866, %v1017
  %v1019 = vpop.f32.mrf.mxu0
  %1020 = vmatprep.mubr.bf16.mxu0 0
  %1021 = vmatmul.mubr.bf16.gmra.mxu0 %v838
  %v1022 = vpop.f32.mrf.mxu0
  %v1023 = vadd.f32 %v866, %v1022
  %v1024 = vpop.f32.mrf.mxu0
  %v1025 = vpop.f32.mrf.mxu0
  %v1026 = vadd.f32 %v866, %v1025
  %v1027 = vpop.f32.mrf.mxu0
  %1028 = vmatprep.mubr.bf16.mxu0 0
  %1029 = vmatmul.mubr.bf16.gmra.mxu0 %v839
  %v1030 = vpop.f32.mrf.mxu0
  %v1031 = vadd.f32 %v866, %v1030
  %v1032 = vpop.f32.mrf.mxu0
  %v1033 = vpop.f32.mrf.mxu0
  %v1034 = vadd.f32 %v866, %v1033
  %v1035 = vpop.f32.mrf.mxu0
  %1036 = vmatprep.mubr.bf16.mxu0 0
  %1037 = vmatmul.mubr.bf16.gmra.mxu0 %v840
  %v1038 = vpop.f32.mrf.mxu0
  %v1039 = vadd.f32 %v866, %v1038
  %v1040 = vpop.f32.mrf.mxu0
  %v1041 = vpop.f32.mrf.mxu0
  %v1042 = vadd.f32 %v866, %v1041
  %v1043 = vpop.f32.mrf.mxu0
  %1044 = vmatprep.mubr.bf16.mxu0 0
  %1045 = vmatmul.mubr.bf16.gmra.mxu0 %v841
  %v1046 = vpop.f32.mrf.mxu0
  %v1047 = vadd.f32 %v866, %v1046
  %v1048 = vpop.f32.mrf.mxu0
  %v1049 = vpop.f32.mrf.mxu0
  %v1050 = vadd.f32 %v866, %v1049
  %v1051 = vpop.f32.mrf.mxu0
  %1052 = vmatprep.mubr.bf16.mxu0 0
  %1053 = vmatmul.mubr.bf16.gmra.mxu0 %v842
  %v1054 = vpop.f32.mrf.mxu0
  %v1055 = vadd.f32 %v866, %v1054
  %v1056 = vpop.f32.mrf.mxu0
  %v1057 = vpop.f32.mrf.mxu0
  %v1058 = vadd.f32 %v866, %v1057
  %v1059 = vpop.f32.mrf.mxu0
  %1060 = vmatprep.mubr.bf16.mxu0 0
  %1061 = vmatmul.mubr.bf16.gmra.mxu0 %v843
  %v1062 = vpop.f32.mrf.mxu0
  %v1063 = vadd.f32 %v866, %v1062
  %v1064 = vpop.f32.mrf.mxu0
  %v1065 = vpop.f32.mrf.mxu0
  %v1066 = vadd.f32 %v866, %v1065
  %v1067 = vpop.f32.mrf.mxu0
  %1068 = vmatprep.mubr.bf16.mxu0 0
  %1069 = vmatmul.mubr.bf16.gmra.mxu0 %v844
  %v1070 = vpop.f32.mrf.mxu0
  %v1071 = vadd.f32 %v866, %v1070
  %v1072 = vpop.f32.mrf.mxu0
  %v1073 = vpop.f32.mrf.mxu0
  %v1074 = vadd.f32 %v866, %v1073
  %v1075 = vpop.f32.mrf.mxu0
  %1076 = vdwg.mxu0
  %vm1077 = vcmask 64512
  %1078 = vst.msk [vmem:[%s7] sm:$0xff] %vm1077, %v951
  %1079 = vst.msk [vmem:[%s7 + $0x8] sm:$0xff] %vm1077, %v954
  %1080 = vst.msk [vmem:[%s7 + $0x10] sm:$0xff] %vm1077, %v959
  %1081 = vst.msk [vmem:[%s7 + $0x18] sm:$0xff] %vm1077, %v962
  %1082 = vst.msk [vmem:[%s7 + $0x20] sm:$0xff] %vm1077, %v967
  %1083 = vst.msk [vmem:[%s7 + $0x28] sm:$0xff] %vm1077, %v970
  %1084 = vst.msk [vmem:[%s7 + $0x30] sm:$0xff] %vm1077, %v975
  %1085 = vst.msk [vmem:[%s7 + $0x38] sm:$0xff] %vm1077, %v978
  %1086 = vst.msk [vmem:[%s7 + $0x40] sm:$0xff] %vm1077, %v983
  %1087 = vst.msk [vmem:[%s7 + $0x48] sm:$0xff] %vm1077, %v986
  %1088 = vst.msk [vmem:[%s7 + $0x50] sm:$0xff] %vm1077, %v991
  %1089 = vst.msk [vmem:[%s7 + $0x58] sm:$0xff] %vm1077, %v994
  %1090 = vst.msk [vmem:[%s7 + $0x60] sm:$0xff] %vm1077, %v999
  %1091 = vst.msk [vmem:[%s7 + $0x68] sm:$0xff] %vm1077, %v1002
  %1092 = vst.msk [vmem:[%s7 + $0x70] sm:$0xff] %vm1077, %v1007
  %1093 = vst.msk [vmem:[%s7 + $0x78] sm:$0xff] %vm1077, %v1010
  %1094 = vst.msk [vmem:[%s7 + $0x80] sm:$0xff] %vm1077, %v1015
  %1095 = vst.msk [vmem:[%s7 + $0x88] sm:$0xff] %vm1077, %v1018
  %1096 = vst.msk [vmem:[%s7 + $0x90] sm:$0xff] %vm1077, %v1023
  %1097 = vst.msk [vmem:[%s7 + $0x98] sm:$0xff] %vm1077, %v1026
  %1098 = vst.msk [vmem:[%s7 + $0xa0] sm:$0xff] %vm1077, %v1031
  %1099 = vst.msk [vmem:[%s7 + $0xa8] sm:$0xff] %vm1077, %v1034
  %1100 = vst.msk [vmem:[%s7 + $0xb0] sm:$0xff] %vm1077, %v1039
  %1101 = vst.msk [vmem:[%s7 + $0xb8] sm:$0xff] %vm1077, %v1042
  %1102 = vst.msk [vmem:[%s7 + $0xc0] sm:$0xff] %vm1077, %v1047
  %1103 = vst.msk [vmem:[%s7 + $0xc8] sm:$0xff] %vm1077, %v1050
  %1104 = vst.msk [vmem:[%s7 + $0xd0] sm:$0xff] %vm1077, %v1055
  %1105 = vst.msk [vmem:[%s7 + $0xd8] sm:$0xff] %vm1077, %v1058
  %1106 = vst.msk [vmem:[%s7 + $0xe0] sm:$0xff] %vm1077, %v1063
  %1107 = vst.msk [vmem:[%s7 + $0xe8] sm:$0xff] %vm1077, %v1066
  %1108 = vst.msk [vmem:[%s7 + $0xf0] sm:$0xff] %vm1077, %v1071
  %1109 = vst.msk [vmem:[%s7 + $0xf8] sm:$0xff] %vm1077, %v1074
  // Predicated region
  $region30: #{tpu_custom_call.1} parent=0 // pred_check
    _
  $region31: #{tpu_custom_call.1} parent=0 // pred_check_branch
    %1111 = sbr.rel (0) target = $region33
  $region32: #{tpu_custom_call.1} parent=0 // pred_region
    _
  $region33: #{tpu_custom_call.1} parent=0 // pred_fallthru
    _
  // Predicated region
  $region34: #{tpu_custom_call.1} parent=0 // pred_check
    _
  $region35: #{tpu_custom_call.1} parent=0 // pred_check_branch
    %1113 = sbr.rel (0) target = $region37
  $region36: #{tpu_custom_call.1} parent=0 // pred_region
    _
  $region37: #{tpu_custom_call.1} parent=0 // pred_fallthru
    _

</llo_original>
